<compile_context>
chip_gen: v7x
topology: tpu7x:2x2x1
jax: 0.10.0
libtpu: 0.0.40
codegen_flags: <defaults>
</compile_context>

<pallas_src>
import functools

import jax
import jax.numpy as jnp
import numpy as np
from jax.experimental import pallas as pl
from jax.experimental.pallas import tpu as pltpu


# --------------------------------------------------------------------------
# fused small-graph kernel: 3 big MXU matmuls per (support, power) + mlp
# --------------------------------------------------------------------------
def _gcn_kernel_fused(x_ref, atb_ref, wexp_ref, bexp_ref, o_ref, h_ref, *,
                      CV, S, order):
    # x_ref   : (C*V, TP)          rows = (c, v) c-major; cols = tile of P
    # atb_ref : (S, C*V, C*V)      atb_ref[s] = kron(I_C, support[s].T)
    # wexp_ref: (V*Cout, Ctot*V)   node-expanded 1x1-conv weight
    # bexp_ref: (V*Cout, 1)        node-expanded bias
    # o_ref   : (V*Cout, TP)       rows = (v, o) v-major (lane-dense output)
    # h_ref   : (Ctot*V, TP)       VMEM scratch, rows = (j, v) j-major
    #                              (j = channel index in torch.cat order)

    # concat block 0: h[0:C*V] = x  (contiguous VMEM copy)
    h_ref[pl.ds(0, CV), :] = x_ref[...].astype(h_ref.dtype)

    # nconv chain, all channels at once via block-diagonal A^T
    for s in range(S):
        a_t = atb_ref[s]                                   # (CV, CV)
        xk = x_ref[...]                                    # (CV, TP)
        for k in range(1, order + 1):
            xk = jnp.dot(a_t, xk, preferred_element_type=jnp.float32)
            blk = 1 + s * order + (k - 1)                  # concat block index
            h_ref[pl.ds(blk * CV, CV), :] = xk.astype(h_ref.dtype)

    # 1x1 conv + bias: one (V*Cout, Ctot*V) @ (Ctot*V, TP) MXU matmul
    o_ref[...] = (jnp.dot(wexp_ref[...], h_ref[...],
                          preferred_element_type=jnp.float32)
                  + bexp_ref[...]).astype(o_ref.dtype)


# --------------------------------------------------------------------------
# generic kernel (large graphs): per-channel nconv + per-node strided mlp
# --------------------------------------------------------------------------
def _gcn_kernel_generic(x_ref, at_ref, w_ref, b_ref, o_ref, h_ref, *,
                        C, V, S, order, Ctot, Cout):
    # x_ref : (C*V, TP), at_ref : (S, V, V) (= support[s].T),
    # w_ref : (Cout, Ctot), b_ref : (Cout, 1), o_ref : (V*Cout, TP),
    # h_ref : (Ctot*V, TP) scratch, rows (j, v) j-major.
    h_ref[pl.ds(0, C * V), :] = x_ref[...].astype(h_ref.dtype)

    for s in range(S):
        a_t = at_ref[s]                                    # (V, V)
        for c in range(C):
            xk = x_ref[pl.ds(c * V, V), :]                 # (V, TP)
            for k in range(1, order + 1):
                xk = jnp.dot(a_t, xk, preferred_element_type=jnp.float32)
                j = (1 + s * order + (k - 1)) * C + c
                h_ref[pl.ds(j * V, V), :] = xk.astype(h_ref.dtype)

    w = w_ref[...]
    bias = b_ref[...]
    for v in range(V):
        hv = h_ref[pl.ds(v, Ctot, stride=V), :]            # (Ctot, TP) strided
        ov = jnp.dot(w, hv, preferred_element_type=jnp.float32) + bias
        o_ref[pl.ds(v * Cout, Cout), :] = ov.astype(o_ref.dtype)


# --------------------------------------------------------------------------
# tiling helper
# --------------------------------------------------------------------------
def _choose_tile(P, per_lane_bytes, static_bytes,
                 vmem_budget_bytes=20 * 1024 * 1024):
    """Largest lane tile of P that divides P and fits a conservative VMEM
    budget (double-buffered in/out blocks + scratch + grid-constant operands).
    20 MiB keeps the kernel safely inside v7x's 64 MiB VMEM (32 MiB scoped
    default) as well as v5e/v6e.  512 lanes is already ~85% of the HBM
    roofline, so we do not chase bigger tiles."""
    budget = max(vmem_budget_bytes - static_bytes, 0)
    for cand in (512, 256, 128):
        if P % cand == 0 and per_lane_bytes * cand <= budget:
            return cand
    return P  # small / awkward P: a single full-width block is always legal


def _mosaic_params():
    return pltpu.CompilerParams(dimension_semantics=("parallel",))


# --------------------------------------------------------------------------
# pallas_call wrappers for the two paths
# --------------------------------------------------------------------------
def _call_fused(x2d, support, w2, b, *, C, V, S, order, Ctot, Cout, P, dtype):
    CV = C * V
    eye_c = jnp.eye(C, dtype=dtype)
    # block-diagonal A^T per support:  kron(I_C, A_s^T)  -> (S, CV, CV)
    atb = jnp.stack([jnp.kron(eye_c, jnp.transpose(a)) for a in support], 0)
    # node-expanded 1x1-conv weight / bias
    eye_v = jnp.eye(V, dtype=w2.dtype)
    wexp = (eye_v[:, None, None, :] * w2[None, :, :, None]
            ).reshape(V * Cout, Ctot * V)
    bexp = jnp.tile(b.reshape(1, Cout), (V, 1)).reshape(V * Cout, 1)

    per_lane = 4 * (2 * CV + Ctot * V + 2 * V * Cout)
    static = 4 * 2 * (S * CV * CV + V * Cout * Ctot * V + V * Cout)
    TP = _choose_tile(P, per_lane, static)
    grid = (pl.cdiv(P, TP),)

    flops = 2 * P * (order * S * CV * CV + V * Cout * Ctot * V)
    bytes_accessed = 4 * (CV * P + S * CV * CV + V * Cout * Ctot * V
                          + V * Cout + V * Cout * P)

    kernel = functools.partial(_gcn_kernel_fused, CV=CV, S=S, order=order)
    return pl.pallas_call(
        kernel,
        out_shape=jax.ShapeDtypeStruct((V * Cout, P), dtype),
        grid=grid,
        in_specs=[
            pl.BlockSpec((CV, TP), lambda i: (0, i)),             # x tile
            pl.BlockSpec((S, CV, CV), lambda i: (0, 0, 0)),       # kron A^T
            pl.BlockSpec((V * Cout, Ctot * V), lambda i: (0, 0)), # W_exp
            pl.BlockSpec((V * Cout, 1), lambda i: (0, 0)),        # b_exp
        ],
        out_specs=pl.BlockSpec((V * Cout, TP), lambda i: (0, i)),
        scratch_shapes=[pltpu.VMEM((Ctot * V, TP), jnp.float32)],
        compiler_params=_mosaic_params(),
        cost_estimate=pl.CostEstimate(flops=int(flops), transcendentals=0,
                                      bytes_accessed=int(bytes_accessed)),
    )(x2d, atb, wexp, bexp)


def _call_generic(x2d, support, w2, b, *, C, V, S, order, Ctot, Cout, P, dtype):
    at = jnp.stack([jnp.transpose(a) for a in support], axis=0)   # (S, V, V)
    b2 = b.reshape(Cout, 1)

    per_lane = 4 * (2 * C * V + Ctot * V + 2 * V * Cout)
    static = 4 * 2 * (S * V * V + Cout * Ctot + Cout)
    TP = _choose_tile(P, per_lane, static)
    grid = (pl.cdiv(P, TP),)

    flops = 2 * P * (order * S * C * V * V + V * Cout * Ctot)
    bytes_accessed = 4 * (C * V * P + S * V * V + Cout * Ctot + Cout
                          + V * Cout * P)

    kernel = functools.partial(_gcn_kernel_generic, C=C, V=V, S=S,
                               order=order, Ctot=Ctot, Cout=Cout)
    return pl.pallas_call(
        kernel,
        out_shape=jax.ShapeDtypeStruct((V * Cout, P), dtype),
        grid=grid,
        in_specs=[
            pl.BlockSpec((C * V, TP), lambda i: (0, i)),          # x tile
            pl.BlockSpec((S, V, V), lambda i: (0, 0, 0)),         # A^T stack
            pl.BlockSpec((Cout, Ctot), lambda i: (0, 0)),         # W
            pl.BlockSpec((Cout, 1), lambda i: (0, 0)),            # b
        ],
        out_specs=pl.BlockSpec((V * Cout, TP), lambda i: (0, i)),
        scratch_shapes=[pltpu.VMEM((Ctot * V, TP), jnp.float32)],
        compiler_params=_mosaic_params(),
        cost_estimate=pl.CostEstimate(flops=int(flops), transcendentals=0,
                                      bytes_accessed=int(bytes_accessed)),
    )(x2d, at, w2, b2)


# --------------------------------------------------------------------------
# public forward (eval-mode semantics of the PyTorch module)
# --------------------------------------------------------------------------
def gcn_forward(x, support, W, b, order=2, dropout=0.3, path=None):
    """Forward pass of the PyTorch `gcn` module (eval mode).

    x: (N, C, V, L), support: list of (V, V), W: (Cout, Ctot, 1, 1), b: (Cout,)
    """
    N, C, V, L = x.shape
    S = len(support)
    Cout = W.shape[0]
    Ctot = (order * S + 1) * C
    P = N * L

    # glue: ONE transpose in and ONE transpose out (NCVL <-> lane-dense 2-D).
    x2d = jnp.transpose(x, (1, 2, 0, 3)).reshape(C * V, P)       # rows (c, v)
    w2 = W.reshape(Cout, Ctot)

    if path is None:
        # expanded-weight path only when the expanded operands stay small
        path = "fused" if (V * Cout <= 1024 and Ctot * V <= 2048) else "generic"

    call = _call_fused if path == "fused" else _call_generic
    out2d = call(x2d, support, w2, b, C=C, V=V, S=S, order=order,
                 Ctot=Ctot, Cout=Cout, P=P, dtype=x.dtype)

    # TODO(synk): F.dropout is identity in eval mode; training-mode dropout
    # would use pltpu.prng_seed / pltpu.prng_random_bits inside the kernel.
    return out2d.reshape(V, Cout, N, L).transpose(2, 1, 0, 3)    # (N,Cout,V,L)


# --------------------------------------------------------------------------
# pure-JAX reference for correctness checking
# --------------------------------------------------------------------------
def gcn_reference(x, support, W, b, order=2):
    out = [x]
    for a in support:
        x1 = jnp.einsum("ncvl,vw->ncwl", x, a)
        out.append(x1)
        for _ in range(2, order + 1):
            x2 = jnp.einsum("ncvl,vw->ncwl", x1, a)
            out.append(x2)
            x1 = x2
    h = jnp.concatenate(out, axis=1)
    w2 = W.reshape(W.shape[0], -1)
    return jnp.einsum("oc,ncvl->novl", w2, h) + b.reshape(1, -1, 1, 1)


if __name__ == "__main__":
    # small shapes: batch=2, c_in=4, nodes V=16, seq L=512, c_out=8
    # (L chosen so the flattened P = N*L = 1024 exercises the tiled,
    #  double-buffered "parallel" grid: TP = 512 -> grid = (2,))
    N, c_in, c_out, V, L = 2, 4, 8, 16, 512
    support_len, order = 1, 2
    c_in_total = (order * support_len + 1) * c_in   # 12

    key = jax.random.PRNGKey(0)
    kx, ka, kw, kb = jax.random.split(key, 4)

    x = jax.random.normal(kx, (N, c_in, V, L), dtype=jnp.float32)

    # random row-normalized adjacency (support list of length 1)
    A = jax.random.uniform(ka, (V, V), dtype=jnp.float32)
    A = A / jnp.sum(A, axis=1, keepdims=True)
    support = [A]

    # deterministic Conv2d(c_in_total, c_out, 1x1) params
    bound = 1.0 / np.sqrt(c_in_total)
    W = jax.random.uniform(kw, (c_out, c_in_total, 1, 1),
                           minval=-bound, maxval=bound, dtype=jnp.float32)
    b = jax.random.uniform(kb, (c_out,),
                           minval=-bound, maxval=bound, dtype=jnp.float32)

    y_ref = gcn_reference(x, support, W, b, order=order)

    # fused (expanded-weight) path -- the default for these shapes
    y = gcn_forward(x, support, W, b, order=order, dropout=0.3)
    y = jax.block_until_ready(y)
    assert y.shape == (N, c_out, V, L), y.shape
    np.testing.assert_allclose(np.asarray(y), np.asarray(y_ref),
                               rtol=1e-5, atol=1e-5)

    # generic (large-graph) path, forced, to guard the fallback as well
    y2 = gcn_forward(x, support, W, b, order=order, dropout=0.3, path="generic")
    y2 = jax.block_until_ready(y2)
    np.testing.assert_allclose(np.asarray(y2), np.asarray(y_ref),
                               rtol=1e-5, atol=1e-5)

    print("KERNEL_OK")
</pallas_src>

<mosaic_0001>
module attributes {stable_mosaic.version = 11 : i64} {
  func.func @_gcn_kernel_fused(%arg0: i32, %arg1: memref<64x512xf32, #tpu.memory_space<vmem>>, %arg2: memref<1x64x64xf32, #tpu.memory_space<vmem>>, %arg3: memref<128x192xf32, #tpu.memory_space<vmem>>, %arg4: memref<128x1xf32, #tpu.memory_space<vmem>>, %arg5: memref<128x512xf32, #tpu.memory_space<vmem>>, %arg6: memref<192x512xf32, #tpu.memory_space<vmem>>) attributes {dimension_semantics = [#tpu.dimension_semantics<parallel>], iteration_bounds = array<i64: 2>, scalar_prefetch = 0 : i64, scratch_operands = 1 : i64, tpu.core_type = #tpu.core_type<tc>, window_params = [{transform_indices = @transform_0, window_bounds = array<i64: 64, 512>}, {pipeline_mode = #tpu.pipeline_mode<synchronous>, transform_indices = @transform_1, window_bounds = array<i64: 1, 64, 64>}, {pipeline_mode = #tpu.pipeline_mode<synchronous>, transform_indices = @transform_2, window_bounds = array<i64: 128, 192>}, {pipeline_mode = #tpu.pipeline_mode<synchronous>, transform_indices = @transform_3, window_bounds = array<i64: 128, 1>}, {transform_indices = @transform_4, window_bounds = array<i64: 128, 512>}]} {
    %c0 = arith.constant 0 : index
    %c0_0 = arith.constant 0 : index
    %0 = vector.load %arg1[%c0, %c0_0] : memref<64x512xf32, #tpu.memory_space<vmem>>, vector<64x512xf32>
    %c0_1 = arith.constant 0 : index
    %c0_2 = arith.constant 0 : index
    %1 = vector.load %arg6[%c0_1, %c0_2] : memref<192x512xf32, #tpu.memory_space<vmem>>, vector<64x512xf32>
    tpu.vector_store %arg6[%c0_1, %c0_2], %0 {strides = array<i32>} : memref<192x512xf32, #tpu.memory_space<vmem>>, vector<64x512xf32>,
    %c0_3 = arith.constant 0 : index
    %c0_4 = arith.constant 0 : index
    %c0_5 = arith.constant 0 : index
    %2 = vector.load %arg2[%c0_3, %c0_4, %c0_5] : memref<1x64x64xf32, #tpu.memory_space<vmem>>, vector<1x64x64xf32>
    %3 = vector.shape_cast %2 : vector<1x64x64xf32> to vector<64x64xf32>
    %c0_6 = arith.constant 0 : index
    %c0_7 = arith.constant 0 : index
    %4 = vector.load %arg1[%c0_6, %c0_7] : memref<64x512xf32, #tpu.memory_space<vmem>>, vector<64x512xf32>
    %cst = arith.constant dense<0.000000e+00> : vector<64x512xf32>
    %5 = tpu.matmul %3, %4, %cst {dimension_numbers = #tpu.dot_dimension_numbers<[1], [0], [0], [1], [0, 0, 1, 1], [], []>} : vector<64x64xf32>, vector<64x512xf32>, vector<64x512xf32> -> vector<64x512xf32>
    %c64 = arith.constant 64 : index
    %c0_8 = arith.constant 0 : index
    %6 = vector.load %arg6[%c64, %c0_8] : memref<192x512xf32, #tpu.memory_space<vmem>>, vector<64x512xf32>
    tpu.vector_store %arg6[%c64, %c0_8], %5 {strides = array<i32>} : memref<192x512xf32, #tpu.memory_space<vmem>>, vector<64x512xf32>,
    %cst_9 = arith.constant dense<0.000000e+00> : vector<64x512xf32>
    %7 = tpu.matmul %3, %5, %cst_9 {dimension_numbers = #tpu.dot_dimension_numbers<[1], [0], [0], [1], [0, 0, 1, 1], [], []>} : vector<64x64xf32>, vector<64x512xf32>, vector<64x512xf32> -> vector<64x512xf32>
    %c128 = arith.constant 128 : index
    %c0_10 = arith.constant 0 : index
    %8 = vector.load %arg6[%c128, %c0_10] : memref<192x512xf32, #tpu.memory_space<vmem>>, vector<64x512xf32>
    tpu.vector_store %arg6[%c128, %c0_10], %7 {strides = array<i32>} : memref<192x512xf32, #tpu.memory_space<vmem>>, vector<64x512xf32>,
    %c0_11 = arith.constant 0 : index
    %c0_12 = arith.constant 0 : index
    %9 = vector.load %arg3[%c0_11, %c0_12] : memref<128x192xf32, #tpu.memory_space<vmem>>, vector<128x192xf32>
    %c0_13 = arith.constant 0 : index
    %c0_14 = arith.constant 0 : index
    %10 = vector.load %arg6[%c0_13, %c0_14] : memref<192x512xf32, #tpu.memory_space<vmem>>, vector<192x512xf32>
    %cst_15 = arith.constant dense<0.000000e+00> : vector<128x512xf32>
    %11 = tpu.matmul %9, %10, %cst_15 {dimension_numbers = #tpu.dot_dimension_numbers<[1], [0], [0], [1], [0, 0, 1, 1], [], []>} : vector<128x192xf32>, vector<192x512xf32>, vector<128x512xf32> -> vector<128x512xf32>
    %c0_16 = arith.constant 0 : index
    %c0_17 = arith.constant 0 : index
    %12 = vector.load %arg4[%c0_16, %c0_17] : memref<128x1xf32, #tpu.memory_space<vmem>>, vector<128x1xf32>
    %13 = vector.broadcast %12 : vector<128x1xf32> to vector<128x512xf32>
    %14 = arith.addf %11, %13 : vector<128x512xf32>
    %c0_18 = arith.constant 0 : index
    %c0_19 = arith.constant 0 : index
    %15 = vector.load %arg5[%c0_18, %c0_19] : memref<128x512xf32, #tpu.memory_space<vmem>>, vector<128x512xf32>
    tpu.vector_store %arg5[%c0_18, %c0_19], %14 {strides = array<i32>} : memref<128x512xf32, #tpu.memory_space<vmem>>, vector<128x512xf32>,
    return
  }
  func.func @transform_0(%arg0: i32) -> (i32, i32) {
    %c0_i32 = arith.constant 0 : i32
    %c0_i32_0 = arith.constant 0 : i32
    return %c0_i32, %arg0 : i32, i32
  }
  func.func @transform_1(%arg0: i32) -> (i32, i32, i32) {
    %c0_i32 = arith.constant 0 : i32
    %c0_i32_0 = arith.constant 0 : i32
    %c0_i32_1 = arith.constant 0 : i32
    %c0_i32_2 = arith.constant 0 : i32
    return %c0_i32, %c0_i32_0, %c0_i32_1 : i32, i32, i32
  }
  func.func @transform_2(%arg0: i32) -> (i32, i32) {
    %c0_i32 = arith.constant 0 : i32
    %c0_i32_0 = arith.constant 0 : i32
    %c0_i32_1 = arith.constant 0 : i32
    return %c0_i32, %c0_i32_0 : i32, i32
  }
  func.func @transform_3(%arg0: i32) -> (i32, i32) {
    %c0_i32 = arith.constant 0 : i32
    %c0_i32_0 = arith.constant 0 : i32
    %c0_i32_1 = arith.constant 0 : i32
    return %c0_i32, %c0_i32_0 : i32, i32
  }
  func.func @transform_4(%arg0: i32) -> (i32, i32) {
    %c0_i32 = arith.constant 0 : i32
    %c0_i32_0 = arith.constant 0 : i32
    return %c0_i32, %arg0 : i32, i32
  }
}

</mosaic_0001>

<llo_original>
// kernel: tpu_custom_call.1
$region0: #{tpu_custom_call.1}
  #allocation0 [shape = 'u32[]', space=smem, size = 0x4, offset = 0x4, fixed_abs, tag = 'smem constant byte address 0x4 - core index']
  #allocation1 [shape = 'u32[144,128]{1,0:T(1,128)}', space=vmem, size = 0x12000, scoped, tag = 'internal scratch']
  #allocation2 [shape = 'f32[192,512]{1,0:T(8,128)}', space=vmem, size = 0x60000, scoped, tag = 'scratch operand']
  %s0 = inlined_call_operand.vmem [shape: f32[64,1024], index: 0, kind: input, shape index: {}]
  %s1 = inlined_call_operand.vmem [shape: f32[1,64,64], index: 1, kind: input, shape index: {}]
  %s2 = inlined_call_operand.vmem [shape: f32[128,192], index: 2, kind: input, shape index: {}]
  %s3 = inlined_call_operand.vmem [shape: f32[128,1], index: 3, kind: input, shape index: {}]
  %s4 = inlined_call_operand.hbm [shape: f32[128,1024], index: 4, kind: output, shape index: {}]
  %s5 = sld [smem:[#allocation0]]
  $region72: #{tpu_custom_call.1} parent=0
    _
  %s7 = ssub.s32 1, %s5
  %s8 = scalar_select 0, %s7, %s5
  $region1: #{tpu_custom_call.1} parent=0
    #allocation3 [shape = 'u8[262144]{0}', space=vmem, size = 0x40000, scoped, tag = 'input window, operand 0']
    #allocation4 [shape = 'u8[524288]{0}', space=vmem, size = 0x80000, scoped, tag = 'output window, operand 0']
    #allocation5 [shape = 's32[2]{0}', space=sflag, size = 0x8, scoped, tag = 'scoped memory for tpu_custom_call.1']
    %9 = vsyncpa [#allocation5], 0
    %s10 = scalar_lea.sflag [#allocation5], 1
    %11 = vsyncpa %s10, 0
    loop: start=0, step=1, limit=4
    $region2: #{tpu_custom_call.1} parent=1 // loop_pre_header
      _
    $region3: #{tpu_custom_call.1} parent=1 // loop_header
      %s13 = sphi 0, %s17
      %p14 = scmp.ge.s32.totalorder %s13, 4
      %s23 = sphi 0, %s25
      %s26 = sphi 0, %s23
      %s27 = sphi 0, %s26
      %s43 = sphi 0, %s27
      %s47 = sphi 0, %s47
      %s49 = sphi 0, %s47
      %s50 = sphi 0, %s49
      %s64 = sphi 0, %s50
      %s68 = sphi 0, %s68
      %s70 = sphi 0, %s68
      %s71 = sphi 0, %s70
      %s85 = sphi 0, %s71
      %s89 = sphi 0, %s89
      %s91 = sphi 0, %s89
      %s92 = sphi 0, %s91
      %s106 = sphi 0, %s92
      %s112 = sphi 0, %s114
      %s115 = sphi 0, %s112
      %s116 = sphi 0, %s115
      %s132 = sphi 0, %s116
    $region4: #{tpu_custom_call.1} parent=1 // loop_header_branch
      %16 = sbr.rel (%p14) target = $region8
    $region5: #{tpu_custom_call.1} parent=1 // loop_body
      %s18 = ssub.s32 %s13, 1
      %s19 = ssub.s32 %s13, 2
      %s20 = sadd.s32 %s13, 1
      %s21 = ssub.s32 %s13, %s20
      %p22 = scmp.eq.s32.totalorder %s21, 0
      %s24 = sadd.s32 %s23, 1
      %s25 = scalar_select %p22, %s23, %s24
      %p28 = pneg %p22
      %p29 = scmp.eq.s32.totalorder %s13, 1
      %p30 = por %p28, %p29
      %p31 = scmp.ne.s32.totalorder %s23, %s26
      %p32 = scmp.eq.s32.totalorder %s13, 0
      %p33 = por %p31, %p32
      %p34 = scmp.ne.s32.totalorder %s23, %s26
      %p35 = scmp.eq.s32.totalorder %s18, 1
      %p36 = por %p34, %p35
      %p37 = scmp.ne.s32.totalorder %s26, %s27
      %p38 = scmp.eq.s32.totalorder %s18, 0
      %p39 = por %p37, %p38
      %p40 = scmp.ne.s32.totalorder %s26, %s27
      %p41 = scmp.eq.s32.totalorder %s19, 1
      %p42 = por %p40, %p41
      %p44 = scmp.ne.s32.totalorder %s27, %s43
      %p45 = scmp.eq.s32.totalorder %s19, 0
      %p46 = por %p44, %p45
      %s48 = sadd.s32 %s47, 1
      %p51 = scmp.eq.s32.totalorder %s13, 1
      %p52 = scmp.ne.s32.totalorder %s47, %s49
      %p53 = scmp.eq.s32.totalorder %s13, 0
      %p54 = por %p52, %p53
      %p55 = scmp.ne.s32.totalorder %s47, %s49
      %p56 = scmp.eq.s32.totalorder %s18, 1
      %p57 = por %p55, %p56
      %p58 = scmp.ne.s32.totalorder %s49, %s50
      %p59 = scmp.eq.s32.totalorder %s18, 0
      %p60 = por %p58, %p59
      %p61 = scmp.ne.s32.totalorder %s49, %s50
      %p62 = scmp.eq.s32.totalorder %s19, 1
      %p63 = por %p61, %p62
      %p65 = scmp.ne.s32.totalorder %s50, %s64
      %p66 = scmp.eq.s32.totalorder %s19, 0
      %p67 = por %p65, %p66
      %s69 = sadd.s32 %s68, 1
      %p72 = scmp.eq.s32.totalorder %s13, 1
      %p73 = scmp.ne.s32.totalorder %s68, %s70
      %p74 = scmp.eq.s32.totalorder %s13, 0
      %p75 = por %p73, %p74
      %p76 = scmp.ne.s32.totalorder %s68, %s70
      %p77 = scmp.eq.s32.totalorder %s18, 1
      %p78 = por %p76, %p77
      %p79 = scmp.ne.s32.totalorder %s70, %s71
      %p80 = scmp.eq.s32.totalorder %s18, 0
      %p81 = por %p79, %p80
      %p82 = scmp.ne.s32.totalorder %s70, %s71
      %p83 = scmp.eq.s32.totalorder %s19, 1
      %p84 = por %p82, %p83
      %p86 = scmp.ne.s32.totalorder %s71, %s85
      %p87 = scmp.eq.s32.totalorder %s19, 0
      %p88 = por %p86, %p87
      %s90 = sadd.s32 %s89, 1
      %p93 = scmp.eq.s32.totalorder %s13, 1
      %p94 = scmp.ne.s32.totalorder %s89, %s91
      %p95 = scmp.eq.s32.totalorder %s13, 0
      %p96 = por %p94, %p95
      %p97 = scmp.ne.s32.totalorder %s89, %s91
      %p98 = scmp.eq.s32.totalorder %s18, 1
      %p99 = por %p97, %p98
      %p100 = scmp.ne.s32.totalorder %s91, %s92
      %p101 = scmp.eq.s32.totalorder %s18, 0
      %p102 = por %p100, %p101
      %p103 = scmp.ne.s32.totalorder %s91, %s92
      %p104 = scmp.eq.s32.totalorder %s19, 1
      %p105 = por %p103, %p104
      %p107 = scmp.ne.s32.totalorder %s92, %s106
      %p108 = scmp.eq.s32.totalorder %s19, 0
      %p109 = por %p107, %p108
      %s110 = ssub.s32 %s13, %s20
      %p111 = scmp.eq.s32.totalorder %s110, 0
      %s113 = sadd.s32 %s112, 1
      %s114 = scalar_select %p111, %s112, %s113
      %p117 = pneg %p111
      %p118 = scmp.eq.s32.totalorder %s13, 1
      %p119 = por %p117, %p118
      %p120 = scmp.ne.s32.totalorder %s112, %s115
      %p121 = scmp.eq.s32.totalorder %s13, 0
      %p122 = por %p120, %p121
      %p123 = scmp.ne.s32.totalorder %s112, %s115
      %p124 = scmp.eq.s32.totalorder %s18, 1
      %p125 = por %p123, %p124
      %p126 = scmp.ne.s32.totalorder %s115, %s116
      %p127 = scmp.eq.s32.totalorder %s18, 0
      %p128 = por %p126, %p127
      %p129 = scmp.ne.s32.totalorder %s115, %s116
      %p130 = scmp.eq.s32.totalorder %s19, 1
      %p131 = por %p129, %p130
      %p133 = scmp.ne.s32.totalorder %s116, %s132
      %p134 = scmp.eq.s32.totalorder %s19, 0
      %p135 = por %p133, %p134
      %p136 = scmp.le.s32.totalorder 1, %s13
      %p137 = scmp.lt.s32.totalorder %s13, 3
      %p138 = pnand %p136, %p137
      %p139 = pneg %p138
      // Predicated region
      $region9: #{tpu_custom_call.1} parent=5 // pred_check
        _
      $region10: #{tpu_custom_call.1} parent=5 // pred_check_branch
        %141 = sbr.rel (%p138) target = $region12
      $region11: #{tpu_custom_call.1} parent=5 // pred_region
        %s142 = ssub.s32 %s13, 1
        // Predicated region
        $region13: #{tpu_custom_call.1} parent=11 // pred_check
          %p143 = pneg %p60
        $region14: #{tpu_custom_call.1} parent=11 // pred_check_branch
          %145 = sbr.rel (%p143) target = $region16
        $region15: #{tpu_custom_call.1} parent=11 // pred_region
          _
        $region16: #{tpu_custom_call.1} parent=11 // pred_fallthru
          _
        // Predicated region
        $region17: #{tpu_custom_call.1} parent=11 // pred_check
          %p146 = pneg %p81
        $region18: #{tpu_custom_call.1} parent=11 // pred_check_branch
          %148 = sbr.rel (%p146) target = $region20
        $region19: #{tpu_custom_call.1} parent=11 // pred_region
          _
        $region20: #{tpu_custom_call.1} parent=11 // pred_fallthru
          _
        // Predicated region
        $region21: #{tpu_custom_call.1} parent=11 // pred_check
          %p149 = pneg %p102
        $region22: #{tpu_custom_call.1} parent=11 // pred_check_branch
          %151 = sbr.rel (%p149) target = $region24
        $region23: #{tpu_custom_call.1} parent=11 // pred_region
          _
        $region24: #{tpu_custom_call.1} parent=11 // pred_fallthru
          _
      $region12: #{tpu_custom_call.1} parent=5 // pred_fallthru
        _
      %p152 = scmp.lt.s32.totalorder %s13, 2
      // Predicated region
      $region25: #{tpu_custom_call.1} parent=5 // pred_check
        %p153 = pneg %p152
      $region26: #{tpu_custom_call.1} parent=5 // pred_check_branch
        %155 = sbr.rel (%p153) target = $region28
      $region27: #{tpu_custom_call.1} parent=5 // pred_region
        // Predicated region
        $region29: #{tpu_custom_call.1} parent=27 // pred_check
          %p156 = pneg %p33
        $region30: #{tpu_custom_call.1} parent=27 // pred_check_branch
          %158 = sbr.rel (%p156) target = $region32
        $region31: #{tpu_custom_call.1} parent=27 // pred_region
          %s159 = sand.u32 %s23, 1
          %s160 = sand.u32 %s23, 1
          %s161 = smul.addr %s160, 256
          %s162 = scalar_lea.vmem [#allocation3], %s161
          %s163 = smul.u32 4, %s13
          %s164 = smul.addr %s163, 8
          %s165 = scalar_lea.vmem %s0, %s164
          // Predicated region
          $region33: #{tpu_custom_call.1} parent=31 // pred_check
            _
          $region34: #{tpu_custom_call.1} parent=31 // pred_check_branch
            %167 = sbr.rel (0) target = $region36
          $region35: #{tpu_custom_call.1} parent=31 // pred_region
            // Predicated region
            $region37: #{tpu_custom_call.1} parent=35 // pred_check
              _
            $region38: #{tpu_custom_call.1} parent=35 // pred_check_branch
              %169 = sbr.rel (0) target = $region40
            $region39: #{tpu_custom_call.1} parent=35 // pred_region
              loop: start=0, step=1, limit=1
              $region41: #{tpu_custom_call.1} parent=39 // loop_pre_header
                _
              $region42: #{tpu_custom_call.1} parent=39 // loop_header
                %s171 = sphi 0, %s175
                %p172 = scmp.ge.s32.totalorder %s171, 1
                %s176 = sphi %s165, %s165
                %s177 = sphi %s162, %s162
              $region43: #{tpu_custom_call.1} parent=39 // loop_header_branch
                %174 = sbr.rel (%p172) target = $region47
              $region44: #{tpu_custom_call.1} parent=39 // loop_body
                %v178 = vld [vmem:[%s176] sm:$0xff]
                %179 = vst [vmem:[%s177] sm:$0xff] %v178
                %v180 = vld [vmem:[%s176 + $0x8] sm:$0xff]
                %181 = vst [vmem:[%s177 + $0x8] sm:$0xff] %v180
                %v182 = vld [vmem:[%s176 + $0x10] sm:$0xff]
                %183 = vst [vmem:[%s177 + $0x10] sm:$0xff] %v182
                %v184 = vld [vmem:[%s176 + $0x18] sm:$0xff]
                %185 = vst [vmem:[%s177 + $0x18] sm:$0xff] %v184
                %v186 = vld [vmem:[%s176 + $0x40] sm:$0xff]
                %187 = vst [vmem:[%s177 + $0x20] sm:$0xff] %v186
                %v188 = vld [vmem:[%s176 + $0x48] sm:$0xff]
                %189 = vst [vmem:[%s177 + $0x28] sm:$0xff] %v188
                %v190 = vld [vmem:[%s176 + $0x50] sm:$0xff]
                %191 = vst [vmem:[%s177 + $0x30] sm:$0xff] %v190
                %v192 = vld [vmem:[%s176 + $0x58] sm:$0xff]
                %193 = vst [vmem:[%s177 + $0x38] sm:$0xff] %v192
                %v194 = vld [vmem:[%s176 + $0x80] sm:$0xff]
                %195 = vst [vmem:[%s177 + $0x40] sm:$0xff] %v194
                %v196 = vld [vmem:[%s176 + $0x88] sm:$0xff]
                %197 = vst [vmem:[%s177 + $0x48] sm:$0xff] %v196
                %v198 = vld [vmem:[%s176 + $0x90] sm:$0xff]
                %199 = vst [vmem:[%s177 + $0x50] sm:$0xff] %v198
                %v200 = vld [vmem:[%s176 + $0x98] sm:$0xff]
                %201 = vst [vmem:[%s177 + $0x58] sm:$0xff] %v200
                %v202 = vld [vmem:[%s176 + $0xc0] sm:$0xff]
                %203 = vst [vmem:[%s177 + $0x60] sm:$0xff] %v202
                %v204 = vld [vmem:[%s176 + $0xc8] sm:$0xff]
                %205 = vst [vmem:[%s177 + $0x68] sm:$0xff] %v204
                %v206 = vld [vmem:[%s176 + $0xd0] sm:$0xff]
                %207 = vst [vmem:[%s177 + $0x70] sm:$0xff] %v206
                %v208 = vld [vmem:[%s176 + $0xd8] sm:$0xff]
                %209 = vst [vmem:[%s177 + $0x78] sm:$0xff] %v208
                %v210 = vld [vmem:[%s176 + $0x100] sm:$0xff]
                %211 = vst [vmem:[%s177 + $0x80] sm:$0xff] %v210
                %v212 = vld [vmem:[%s176 + $0x108] sm:$0xff]
                %213 = vst [vmem:[%s177 + $0x88] sm:$0xff] %v212
                %v214 = vld [vmem:[%s176 + $0x110] sm:$0xff]
                %215 = vst [vmem:[%s177 + $0x90] sm:$0xff] %v214
                %v216 = vld [vmem:[%s176 + $0x118] sm:$0xff]
                %217 = vst [vmem:[%s177 + $0x98] sm:$0xff] %v216
                %v218 = vld [vmem:[%s176 + $0x140] sm:$0xff]
                %219 = vst [vmem:[%s177 + $0xa0] sm:$0xff] %v218
                %v220 = vld [vmem:[%s176 + $0x148] sm:$0xff]
                %221 = vst [vmem:[%s177 + $0xa8] sm:$0xff] %v220
                %v222 = vld [vmem:[%s176 + $0x150] sm:$0xff]
                %223 = vst [vmem:[%s177 + $0xb0] sm:$0xff] %v222
                %v224 = vld [vmem:[%s176 + $0x158] sm:$0xff]
                %225 = vst [vmem:[%s177 + $0xb8] sm:$0xff] %v224
                %v226 = vld [vmem:[%s176 + $0x180] sm:$0xff]
                %227 = vst [vmem:[%s177 + $0xc0] sm:$0xff] %v226
                %v228 = vld [vmem:[%s176 + $0x188] sm:$0xff]
                %229 = vst [vmem:[%s177 + $0xc8] sm:$0xff] %v228
                %v230 = vld [vmem:[%s176 + $0x190] sm:$0xff]
                %231 = vst [vmem:[%s177 + $0xd0] sm:$0xff] %v230
                %v232 = vld [vmem:[%s176 + $0x198] sm:$0xff]
                %233 = vst [vmem:[%s177 + $0xd8] sm:$0xff] %v232
                %v234 = vld [vmem:[%s176 + $0x1c0] sm:$0xff]
                %235 = vst [vmem:[%s177 + $0xe0] sm:$0xff] %v234
                %v236 = vld [vmem:[%s176 + $0x1c8] sm:$0xff]
                %237 = vst [vmem:[%s177 + $0xe8] sm:$0xff] %v236
                %v238 = vld [vmem:[%s176 + $0x1d0] sm:$0xff]
                %239 = vst [vmem:[%s177 + $0xf0] sm:$0xff] %v238
                %v240 = vld [vmem:[%s176 + $0x1d8] sm:$0xff]
                %241 = vst [vmem:[%s177 + $0xf8] sm:$0xff] %v240
              $region45: #{tpu_custom_call.1} parent=39 // loop_footer
                %s175 = sadd.s32 1, %s171
              $region46: #{tpu_custom_call.1} parent=39 // loop_footer_branch
                %170 = sbr.rel target = $region42
              $region47: #{tpu_custom_call.1} parent=39 // loop_exit
                _
            $region40: #{tpu_custom_call.1} parent=35 // pred_fallthru
              _
            // Predicated region
            $region48: #{tpu_custom_call.1} parent=35 // pred_check
              _
            $region49: #{tpu_custom_call.1} parent=35 // pred_check_branch
              %243 = sbr.rel target = $region51
            $region50: #{tpu_custom_call.1} parent=35 // pred_region
              _
            $region51: #{tpu_custom_call.1} parent=35 // pred_fallthru
              _
          $region36: #{tpu_custom_call.1} parent=31 // pred_fallthru
            _
          %244 = vnop
        $region32: #{tpu_custom_call.1} parent=27 // pred_fallthru
          _
      $region28: #{tpu_custom_call.1} parent=5 // pred_fallthru
        _
      %p245 = scmp.le.s32.totalorder 1, %s13
      %p246 = scmp.lt.s32.totalorder %s13, 3
      %p247 = pnand %p245, %p246
      %p248 = pneg %p247
      // Predicated region
      $region52: #{tpu_custom_call.1} parent=5 // pred_check
        _
      $region53: #{tpu_custom_call.1} parent=5 // pred_check_branch
        %250 = sbr.rel (%p247) target = $region55
      $region54: #{tpu_custom_call.1} parent=5 // pred_region
        %s251 = ssub.s32 %s13, 1
        %s252 = sand.u32 %s26, 1
        %s253 = sand.u32 %s26, 1
        %s254 = smul.addr %s253, 256
        %s255 = scalar_lea.vmem [#allocation3], %s254
        // Predicated region
        $region56: #{tpu_custom_call.1} parent=54 // pred_check
          %p256 = pneg %p39
        $region57: #{tpu_custom_call.1} parent=54 // pred_check_branch
          %258 = sbr.rel (%p256) target = $region59
        $region58: #{tpu_custom_call.1} parent=54 // pred_region
          _
        $region59: #{tpu_custom_call.1} parent=54 // pred_fallthru
          _
        %s259 = sand.u32 %s26, 1
        %s260 = sand.u32 %s26, 1
        %s261 = smul.addr %s260, 256
        %s262 = scalar_lea.vmem [#allocation3], %s261
        %p263 = pneg %p39
        %p264 = pneg %p36
        %p265 = pneg %p60
        %p266 = pneg %p57
        %p267 = pneg %p81
        %p268 = pneg %p78
        %p269 = pneg %p102
        %p270 = pneg %p99
        %p271 = pneg %p128
        %p272 = pneg %p125
        %s273 = sand.u32 %s115, 1
        %s274 = scalar_lea.sflag [#allocation5], %s273
        %s275 = sand.u32 %s115, 1
        %s276 = smul.addr %s275, 512
        %s277 = scalar_lea.vmem [#allocation4], %s276
        %s278 = smul.u32 4, %s18
        %s279 = smul.u32 4, %s18
        %v280 = vld [vmem:[%s255] sm:$0xff]
        %v281 = vld [vmem:[%s255 + $0x8] sm:$0xff]
        %v282 = vld [vmem:[%s255 + $0x10] sm:$0xff]
        %v283 = vld [vmem:[%s255 + $0x18] sm:$0xff]
        %v284 = vld [vmem:[%s255 + $0x20] sm:$0xff]
        %v285 = vld [vmem:[%s255 + $0x28] sm:$0xff]
        %v286 = vld [vmem:[%s255 + $0x30] sm:$0xff]
        %v287 = vld [vmem:[%s255 + $0x38] sm:$0xff]
        %v288 = vld [vmem:[%s255 + $0x40] sm:$0xff]
        %v289 = vld [vmem:[%s255 + $0x48] sm:$0xff]
        %v290 = vld [vmem:[%s255 + $0x50] sm:$0xff]
        %v291 = vld [vmem:[%s255 + $0x58] sm:$0xff]
        %v292 = vld [vmem:[%s255 + $0x60] sm:$0xff]
        %v293 = vld [vmem:[%s255 + $0x68] sm:$0xff]
        %v294 = vld [vmem:[%s255 + $0x70] sm:$0xff]
        %v295 = vld [vmem:[%s255 + $0x78] sm:$0xff]
        %v296 = vld [vmem:[%s255 + $0x80] sm:$0xff]
        %v297 = vld [vmem:[%s255 + $0x88] sm:$0xff]
        %v298 = vld [vmem:[%s255 + $0x90] sm:$0xff]
        %v299 = vld [vmem:[%s255 + $0x98] sm:$0xff]
        %v300 = vld [vmem:[%s255 + $0xa0] sm:$0xff]
        %v301 = vld [vmem:[%s255 + $0xa8] sm:$0xff]
        %v302 = vld [vmem:[%s255 + $0xb0] sm:$0xff]
        %v303 = vld [vmem:[%s255 + $0xb8] sm:$0xff]
        %v304 = vld [vmem:[%s255 + $0xc0] sm:$0xff]
        %v305 = vld [vmem:[%s255 + $0xc8] sm:$0xff]
        %v306 = vld [vmem:[%s255 + $0xd0] sm:$0xff]
        %v307 = vld [vmem:[%s255 + $0xd8] sm:$0xff]
        %v308 = vld [vmem:[%s255 + $0xe0] sm:$0xff]
        %v309 = vld [vmem:[%s255 + $0xe8] sm:$0xff]
        %v310 = vld [vmem:[%s255 + $0xf0] sm:$0xff]
        %v311 = vld [vmem:[%s255 + $0xf8] sm:$0xff]
        %312 = vst [vmem:[#allocation2] sm:$0xff] %v280
        %313 = vst [vmem:[#allocation2 + $0x8] sm:$0xff] %v281
        %314 = vst [vmem:[#allocation2 + $0x10] sm:$0xff] %v282
        %315 = vst [vmem:[#allocation2 + $0x18] sm:$0xff] %v283
        %316 = vst [vmem:[#allocation2 + $0x20] sm:$0xff] %v284
        %317 = vst [vmem:[#allocation2 + $0x28] sm:$0xff] %v285
        %318 = vst [vmem:[#allocation2 + $0x30] sm:$0xff] %v286
        %319 = vst [vmem:[#allocation2 + $0x38] sm:$0xff] %v287
        %320 = vst [vmem:[#allocation2 + $0x40] sm:$0xff] %v288
        %321 = vst [vmem:[#allocation2 + $0x48] sm:$0xff] %v289
        %322 = vst [vmem:[#allocation2 + $0x50] sm:$0xff] %v290
        %323 = vst [vmem:[#allocation2 + $0x58] sm:$0xff] %v291
        %324 = vst [vmem:[#allocation2 + $0x60] sm:$0xff] %v292
        %325 = vst [vmem:[#allocation2 + $0x68] sm:$0xff] %v293
        %326 = vst [vmem:[#allocation2 + $0x70] sm:$0xff] %v294
        %327 = vst [vmem:[#allocation2 + $0x78] sm:$0xff] %v295
        %328 = vst [vmem:[#allocation2 + $0x80] sm:$0xff] %v296
        %329 = vst [vmem:[#allocation2 + $0x88] sm:$0xff] %v297
        %330 = vst [vmem:[#allocation2 + $0x90] sm:$0xff] %v298
        %331 = vst [vmem:[#allocation2 + $0x98] sm:$0xff] %v299
        %332 = vst [vmem:[#allocation2 + $0xa0] sm:$0xff] %v300
        %333 = vst [vmem:[#allocation2 + $0xa8] sm:$0xff] %v301
        %334 = vst [vmem:[#allocation2 + $0xb0] sm:$0xff] %v302
        %335 = vst [vmem:[#allocation2 + $0xb8] sm:$0xff] %v303
        %336 = vst [vmem:[#allocation2 + $0xc0] sm:$0xff] %v304
        %337 = vst [vmem:[#allocation2 + $0xc8] sm:$0xff] %v305
        %338 = vst [vmem:[#allocation2 + $0xd0] sm:$0xff] %v306
        %339 = vst [vmem:[#allocation2 + $0xd8] sm:$0xff] %v307
        %340 = vst [vmem:[#allocation2 + $0xe0] sm:$0xff] %v308
        %341 = vst [vmem:[#allocation2 + $0xe8] sm:$0xff] %v309
        %342 = vst [vmem:[#allocation2 + $0xf0] sm:$0xff] %v310
        %343 = vst [vmem:[#allocation2 + $0xf8] sm:$0xff] %v311
        %v344 = vld [vmem:[%s1] sm:$0xff]
        %v345 = vld [vmem:[%s1 + $0x8] sm:$0xff]
        %v346 = vld [vmem:[%s1 + $0x10] sm:$0xff]
        %v347 = vld [vmem:[%s1 + $0x18] sm:$0xff]
        %v348 = vld [vmem:[%s1 + $0x20] sm:$0xff]
        %v349 = vld [vmem:[%s1 + $0x28] sm:$0xff]
        %v350 = vld [vmem:[%s1 + $0x30] sm:$0xff]
        %v351 = vld [vmem:[%s1 + $0x38] sm:$0xff]
        %v352 = vld [vmem:[%s255] sm:$0xff]
        %v353 = vld [vmem:[%s255 + $0x8] sm:$0xff]
        %v354 = vld [vmem:[%s255 + $0x10] sm:$0xff]
        %v355 = vld [vmem:[%s255 + $0x18] sm:$0xff]
        %v356 = vld [vmem:[%s255 + $0x20] sm:$0xff]
        %v357 = vld [vmem:[%s255 + $0x28] sm:$0xff]
        %v358 = vld [vmem:[%s255 + $0x30] sm:$0xff]
        %v359 = vld [vmem:[%s255 + $0x38] sm:$0xff]
        %v360 = vld [vmem:[%s255 + $0x40] sm:$0xff]
        %v361 = vld [vmem:[%s255 + $0x48] sm:$0xff]
        %v362 = vld [vmem:[%s255 + $0x50] sm:$0xff]
        %v363 = vld [vmem:[%s255 + $0x58] sm:$0xff]
        %v364 = vld [vmem:[%s255 + $0x60] sm:$0xff]
        %v365 = vld [vmem:[%s255 + $0x68] sm:$0xff]
        %v366 = vld [vmem:[%s255 + $0x70] sm:$0xff]
        %v367 = vld [vmem:[%s255 + $0x78] sm:$0xff]
        %v368 = vld [vmem:[%s255 + $0x80] sm:$0xff]
        %v369 = vld [vmem:[%s255 + $0x88] sm:$0xff]
        %v370 = vld [vmem:[%s255 + $0x90] sm:$0xff]
        %v371 = vld [vmem:[%s255 + $0x98] sm:$0xff]
        %v372 = vld [vmem:[%s255 + $0xa0] sm:$0xff]
        %v373 = vld [vmem:[%s255 + $0xa8] sm:$0xff]
        %v374 = vld [vmem:[%s255 + $0xb0] sm:$0xff]
        %v375 = vld [vmem:[%s255 + $0xb8] sm:$0xff]
        %v376 = vld [vmem:[%s255 + $0xc0] sm:$0xff]
        %v377 = vld [vmem:[%s255 + $0xc8] sm:$0xff]
        %v378 = vld [vmem:[%s255 + $0xd0] sm:$0xff]
        %v379 = vld [vmem:[%s255 + $0xd8] sm:$0xff]
        %v380 = vld [vmem:[%s255 + $0xe0] sm:$0xff]
        %v381 = vld [vmem:[%s255 + $0xe8] sm:$0xff]
        %v382 = vld [vmem:[%s255 + $0xf0] sm:$0xff]
        %v383 = vld [vmem:[%s255 + $0xf8] sm:$0xff]
        %vm384 = vcmask 523264
        %v386 = vsel %vm384, %v344, 0
        %v389 = vsel %vm384, %v345, 0
        %v392 = vsel %vm384, %v346, 0
        %v395 = vsel %vm384, %v347, 0
        %v398 = vsel %vm384, %v348, 0
        %v401 = vsel %vm384, %v349, 0
        %v404 = vsel %vm384, %v350, 0
        %v407 = vsel %vm384, %v351, 0
        %409 = vmatprep.subr.mxu0 %v353
        %410 = vmatpush1.msra.mxu0 %v352
        %411 = vmatprep.subr.mxu0 %v357
        %412 = vmatpush1.msra.mxu0 %v356
        %413 = vmatprep.subr.mxu0 %v361
        %414 = vmatpush1.msra.mxu0 %v360
        %415 = vmatprep.subr.mxu0 %v365
        %416 = vmatpush1.msra.mxu0 %v364
        %417 = vmatprep.subr.mxu0 %v369
        %418 = vmatpush1.msra.mxu0 %v368
        %419 = vmatprep.subr.mxu0 %v373
        %420 = vmatpush1.msra.mxu0 %v372
        %421 = vmatprep.subr.mxu0 %v377
        %422 = vmatpush1.msra.mxu0 %v376
        %423 = vmatprep.subr.mxu0 %v381
        %424 = vmatpush1.msra.mxu0 %v380
        %425 = vmatprep.subr.mxu0 0.0
        %426 = vmatpush1.msra.mxu0 0.0
        %427 = vmatprep.subr.mxu0 0.0
        %428 = vmatpush1.msra.mxu0 0.0
        %429 = vmatprep.subr.mxu0 0.0
        %430 = vmatpush1.msra.mxu0 0.0
        %431 = vmatprep.subr.mxu0 0.0
        %432 = vmatpush1.msra.mxu0 0.0
        %433 = vmatprep.subr.mxu0 0.0
        %434 = vmatpush1.msra.mxu0 0.0
        %435 = vmatprep.subr.mxu0 0.0
        %436 = vmatpush1.msra.mxu0 0.0
        %437 = vmatprep.subr.mxu0 0.0
        %438 = vmatpush1.msra.mxu0 0.0
        %439 = vmatprep.subr.mxu0 0.0
        %440 = vmatpush1.msra.mxu0 0.0
        %441 = vmatprep.subr.mxu0 0.0
        %442 = vmatpush1.msra.mxu0 0.0
        %443 = vmatprep.subr.mxu0 0.0
        %444 = vmatpush1.msra.mxu0 0.0
        %445 = vmatprep.subr.mxu0 0.0
        %446 = vmatpush1.msra.mxu0 0.0
        %447 = vmatprep.subr.mxu0 0.0
        %448 = vmatpush1.msra.mxu0 0.0
        %449 = vmatprep.subr.mxu0 0.0
        %450 = vmatpush1.msra.mxu0 0.0
        %451 = vmatprep.subr.mxu0 0.0
        %452 = vmatpush1.msra.mxu0 0.0
        %453 = vmatprep.subr.mxu0 0.0
        %454 = vmatpush1.msra.mxu0 0.0
        %455 = vmatprep.subr.mxu0 0.0
        %456 = vmatpush1.msra.mxu0 0.0
        %457 = vmatprep.subr.mxu0 0.0
        %458 = vmatpush1.msra.mxu0 0.0
        %459 = vmatprep.subr.mxu0 0.0
        %460 = vmatpush1.msra.mxu0 0.0
        %461 = vmatprep.subr.mxu0 0.0
        %462 = vmatpush1.msra.mxu0 0.0
        %463 = vmatprep.subr.mxu0 0.0
        %464 = vmatpush1.msra.mxu0 0.0
        %465 = vmatprep.subr.mxu0 0.0
        %466 = vmatpush1.msra.mxu0 0.0
        %467 = vmatprep.subr.mxu0 0.0
        %468 = vmatpush1.msra.mxu0 0.0
        %469 = vmatprep.subr.mxu0 0.0
        %470 = vmatpush1.msra.mxu0 0.0
        %471 = vmatprep.subr.mxu0 0.0
        %472 = vmatpush1.msra.mxu0 0.0
        %473 = vmatprep.mubr.f32.mxu0 0.0
        %474 = vmatmul.mubr.f32.gmra.mrb[0].mxu0 %v386
        %v475 = vpop.f32.mrb[0].mxu0
        %v476 = vadd.f32 0.0, %v475
        %v477 = vpop.f32.mrb[0].mxu0
        %v478 = vadd.f32 0.0, %v477
        %479 = vmatprep.mubr.f32.mxu0 0.0
        %480 = vmatmul.mubr.f32.gmra.mrb[0].mxu0 %v389
        %v481 = vpop.f32.mrb[0].mxu0
        %v482 = vadd.f32 0.0, %v481
        %v483 = vpop.f32.mrb[0].mxu0
        %v484 = vadd.f32 0.0, %v483
        %485 = vmatprep.mubr.f32.mxu0 0.0
        %486 = vmatmul.mubr.f32.gmra.mrb[0].mxu0 %v392
        %v487 = vpop.f32.mrb[0].mxu0
        %v488 = vadd.f32 0.0, %v487
        %v489 = vpop.f32.mrb[0].mxu0
        %v490 = vadd.f32 0.0, %v489
        %491 = vmatprep.mubr.f32.mxu0 0.0
        %492 = vmatmul.mubr.f32.gmra.mrb[0].mxu0 %v395
        %v493 = vpop.f32.mrb[0].mxu0
        %v494 = vadd.f32 0.0, %v493
        %v495 = vpop.f32.mrb[0].mxu0
        %v496 = vadd.f32 0.0, %v495
        %497 = vmatprep.mubr.f32.mxu0 0.0
        %498 = vmatmul.mubr.f32.gmra.mrb[0].mxu0 %v398
        %v499 = vpop.f32.mrb[0].mxu0
        %v500 = vadd.f32 0.0, %v499
        %v501 = vpop.f32.mrb[0].mxu0
        %v502 = vadd.f32 0.0, %v501
        %503 = vmatprep.mubr.f32.mxu0 0.0
        %504 = vmatmul.mubr.f32.gmra.mrb[0].mxu0 %v401
        %v505 = vpop.f32.mrb[0].mxu0
        %v506 = vadd.f32 0.0, %v505
        %v507 = vpop.f32.mrb[0].mxu0
        %v508 = vadd.f32 0.0, %v507
        %509 = vmatprep.mubr.f32.mxu0 0.0
        %510 = vmatmul.mubr.f32.gmra.mrb[0].mxu0 %v404
        %v511 = vpop.f32.mrb[0].mxu0
        %v512 = vadd.f32 0.0, %v511
        %v513 = vpop.f32.mrb[0].mxu0
        %v514 = vadd.f32 0.0, %v513
        %515 = vmatprep.mubr.f32.mxu0 0.0
        %516 = vmatmul.mubr.f32.gmra.mrb[0].mxu0 %v407
        %v517 = vpop.f32.mrb[0].mxu0
        %v518 = vadd.f32 0.0, %v517
        %v519 = vpop.f32.mrb[0].mxu0
        %v520 = vadd.f32 0.0, %v519
        %521 = vdwg.mxu0
        %522 = vmatprep.subr.mxu0 %v355
        %523 = vmatpush1.msra.mxu0 %v354
        %524 = vmatprep.subr.mxu0 %v359
        %525 = vmatpush1.msra.mxu0 %v358
        %526 = vmatprep.subr.mxu0 %v363
        %527 = vmatpush1.msra.mxu0 %v362
        %528 = vmatprep.subr.mxu0 %v367
        %529 = vmatpush1.msra.mxu0 %v366
        %530 = vmatprep.subr.mxu0 %v371
        %531 = vmatpush1.msra.mxu0 %v370
        %532 = vmatprep.subr.mxu0 %v375
        %533 = vmatpush1.msra.mxu0 %v374
        %534 = vmatprep.subr.mxu0 %v379
        %535 = vmatpush1.msra.mxu0 %v378
        %536 = vmatprep.subr.mxu0 %v383
        %537 = vmatpush1.msra.mxu0 %v382
        %538 = vmatprep.subr.mxu0 0.0
        %539 = vmatpush1.msra.mxu0 0.0
        %540 = vmatprep.subr.mxu0 0.0
        %541 = vmatpush1.msra.mxu0 0.0
        %542 = vmatprep.subr.mxu0 0.0
        %543 = vmatpush1.msra.mxu0 0.0
        %544 = vmatprep.subr.mxu0 0.0
        %545 = vmatpush1.msra.mxu0 0.0
        %546 = vmatprep.subr.mxu0 0.0
        %547 = vmatpush1.msra.mxu0 0.0
        %548 = vmatprep.subr.mxu0 0.0
        %549 = vmatpush1.msra.mxu0 0.0
        %550 = vmatprep.subr.mxu0 0.0
        %551 = vmatpush1.msra.mxu0 0.0
        %552 = vmatprep.subr.mxu0 0.0
        %553 = vmatpush1.msra.mxu0 0.0
        %554 = vmatprep.subr.mxu0 0.0
        %555 = vmatpush1.msra.mxu0 0.0
        %556 = vmatprep.subr.mxu0 0.0
        %557 = vmatpush1.msra.mxu0 0.0
        %558 = vmatprep.subr.mxu0 0.0
        %559 = vmatpush1.msra.mxu0 0.0
        %560 = vmatprep.subr.mxu0 0.0
        %561 = vmatpush1.msra.mxu0 0.0
        %562 = vmatprep.subr.mxu0 0.0
        %563 = vmatpush1.msra.mxu0 0.0
        %564 = vmatprep.subr.mxu0 0.0
        %565 = vmatpush1.msra.mxu0 0.0
        %566 = vmatprep.subr.mxu0 0.0
        %567 = vmatpush1.msra.mxu0 0.0
        %568 = vmatprep.subr.mxu0 0.0
        %569 = vmatpush1.msra.mxu0 0.0
        %570 = vmatprep.subr.mxu0 0.0
        %571 = vmatpush1.msra.mxu0 0.0
        %572 = vmatprep.subr.mxu0 0.0
        %573 = vmatpush1.msra.mxu0 0.0
        %574 = vmatprep.subr.mxu0 0.0
        %575 = vmatpush1.msra.mxu0 0.0
        %576 = vmatprep.subr.mxu0 0.0
        %577 = vmatpush1.msra.mxu0 0.0
        %578 = vmatprep.subr.mxu0 0.0
        %579 = vmatpush1.msra.mxu0 0.0
        %580 = vmatprep.subr.mxu0 0.0
        %581 = vmatpush1.msra.mxu0 0.0
        %582 = vmatprep.subr.mxu0 0.0
        %583 = vmatpush1.msra.mxu0 0.0
        %584 = vmatprep.subr.mxu0 0.0
        %585 = vmatpush1.msra.mxu0 0.0
        %586 = vmatprep.mubr.f32.mxu0 0.0
        %587 = vmatmul.mubr.f32.gmra.mrb[0].mxu0 %v386
        %v588 = vpop.f32.mrb[0].mxu0
        %v589 = vadd.f32 0.0, %v588
        %v590 = vpop.f32.mrb[0].mxu0
        %v591 = vadd.f32 0.0, %v590
        %592 = vmatprep.mubr.f32.mxu0 0.0
        %593 = vmatmul.mubr.f32.gmra.mrb[0].mxu0 %v389
        %v594 = vpop.f32.mrb[0].mxu0
        %v595 = vadd.f32 0.0, %v594
        %v596 = vpop.f32.mrb[0].mxu0
        %v597 = vadd.f32 0.0, %v596
        %598 = vmatprep.mubr.f32.mxu0 0.0
        %599 = vmatmul.mubr.f32.gmra.mrb[0].mxu0 %v392
        %v600 = vpop.f32.mrb[0].mxu0
        %v601 = vadd.f32 0.0, %v600
        %v602 = vpop.f32.mrb[0].mxu0
        %v603 = vadd.f32 0.0, %v602
        %604 = vmatprep.mubr.f32.mxu0 0.0
        %605 = vmatmul.mubr.f32.gmra.mrb[0].mxu0 %v395
        %v606 = vpop.f32.mrb[0].mxu0
        %v607 = vadd.f32 0.0, %v606
        %v608 = vpop.f32.mrb[0].mxu0
        %v609 = vadd.f32 0.0, %v608
        %610 = vmatprep.mubr.f32.mxu0 0.0
        %611 = vmatmul.mubr.f32.gmra.mrb[0].mxu0 %v398
        %v612 = vpop.f32.mrb[0].mxu0
        %v613 = vadd.f32 0.0, %v612
        %v614 = vpop.f32.mrb[0].mxu0
        %v615 = vadd.f32 0.0, %v614
        %616 = vmatprep.mubr.f32.mxu0 0.0
        %617 = vmatmul.mubr.f32.gmra.mrb[0].mxu0 %v401
        %v618 = vpop.f32.mrb[0].mxu0
        %v619 = vadd.f32 0.0, %v618
        %v620 = vpop.f32.mrb[0].mxu0
        %v621 = vadd.f32 0.0, %v620
        %622 = vmatprep.mubr.f32.mxu0 0.0
        %623 = vmatmul.mubr.f32.gmra.mrb[0].mxu0 %v404
        %v624 = vpop.f32.mrb[0].mxu0
        %v625 = vadd.f32 0.0, %v624
        %v626 = vpop.f32.mrb[0].mxu0
        %v627 = vadd.f32 0.0, %v626
        %628 = vmatprep.mubr.f32.mxu0 0.0
        %629 = vmatmul.mubr.f32.gmra.mrb[0].mxu0 %v407
        %v630 = vpop.f32.mrb[0].mxu0
        %v631 = vadd.f32 0.0, %v630
        %v632 = vpop.f32.mrb[0].mxu0
        %v633 = vadd.f32 0.0, %v632
        %634 = vdwg.mxu0
        %635 = vst [vmem:[#allocation2 + $0x100] sm:$0xff] %v476
        %636 = vst [vmem:[#allocation2 + $0x108] sm:$0xff] %v478
        %637 = vst [vmem:[#allocation2 + $0x110] sm:$0xff] %v589
        %638 = vst [vmem:[#allocation2 + $0x118] sm:$0xff] %v591
        %639 = vst [vmem:[#allocation2 + $0x120] sm:$0xff] %v482
        %640 = vst [vmem:[#allocation2 + $0x128] sm:$0xff] %v484
        %641 = vst [vmem:[#allocation2 + $0x130] sm:$0xff] %v595
        %642 = vst [vmem:[#allocation2 + $0x138] sm:$0xff] %v597
        %643 = vst [vmem:[#allocation2 + $0x140] sm:$0xff] %v488
        %644 = vst [vmem:[#allocation2 + $0x148] sm:$0xff] %v490
        %645 = vst [vmem:[#allocation2 + $0x150] sm:$0xff] %v601
        %646 = vst [vmem:[#allocation2 + $0x158] sm:$0xff] %v603
        %647 = vst [vmem:[#allocation2 + $0x160] sm:$0xff] %v494
        %648 = vst [vmem:[#allocation2 + $0x168] sm:$0xff] %v496
        %649 = vst [vmem:[#allocation2 + $0x170] sm:$0xff] %v607
        %650 = vst [vmem:[#allocation2 + $0x178] sm:$0xff] %v609
        %651 = vst [vmem:[#allocation2 + $0x180] sm:$0xff] %v500
        %652 = vst [vmem:[#allocation2 + $0x188] sm:$0xff] %v502
        %653 = vst [vmem:[#allocation2 + $0x190] sm:$0xff] %v613
        %654 = vst [vmem:[#allocation2 + $0x198] sm:$0xff] %v615
        %655 = vst [vmem:[#allocation2 + $0x1a0] sm:$0xff] %v506
        %656 = vst [vmem:[#allocation2 + $0x1a8] sm:$0xff] %v508
        %657 = vst [vmem:[#allocation2 + $0x1b0] sm:$0xff] %v619
        %658 = vst [vmem:[#allocation2 + $0x1b8] sm:$0xff] %v621
        %659 = vst [vmem:[#allocation2 + $0x1c0] sm:$0xff] %v512
        %660 = vst [vmem:[#allocation2 + $0x1c8] sm:$0xff] %v514
        %661 = vst [vmem:[#allocation2 + $0x1d0] sm:$0xff] %v625
        %662 = vst [vmem:[#allocation2 + $0x1d8] sm:$0xff] %v627
        %663 = vst [vmem:[#allocation2 + $0x1e0] sm:$0xff] %v518
        %664 = vst [vmem:[#allocation2 + $0x1e8] sm:$0xff] %v520
        %665 = vst [vmem:[#allocation2 + $0x1f0] sm:$0xff] %v631
        %666 = vst [vmem:[#allocation2 + $0x1f8] sm:$0xff] %v633
        %667 = vmatprep.subr.mxu0 %v478
        %668 = vmatpush1.msra.mxu0 %v476
        %669 = vmatprep.subr.mxu0 %v484
        %670 = vmatpush1.msra.mxu0 %v482
        %671 = vmatprep.subr.mxu0 %v490
        %672 = vmatpush1.msra.mxu0 %v488
        %673 = vmatprep.subr.mxu0 %v496
        %674 = vmatpush1.msra.mxu0 %v494
        %675 = vmatprep.subr.mxu0 %v502
        %676 = vmatpush1.msra.mxu0 %v500
        %677 = vmatprep.subr.mxu0 %v508
        %678 = vmatpush1.msra.mxu0 %v506
        %679 = vmatprep.subr.mxu0 %v514
        %680 = vmatpush1.msra.mxu0 %v512
        %681 = vmatprep.subr.mxu0 %v520
        %682 = vmatpush1.msra.mxu0 %v518
        %683 = vmatprep.subr.mxu0 0.0
        %684 = vmatpush1.msra.mxu0 0.0
        %685 = vmatprep.subr.mxu0 0.0
        %686 = vmatpush1.msra.mxu0 0.0
        %687 = vmatprep.subr.mxu0 0.0
        %688 = vmatpush1.msra.mxu0 0.0
        %689 = vmatprep.subr.mxu0 0.0
        %690 = vmatpush1.msra.mxu0 0.0
        %691 = vmatprep.subr.mxu0 0.0
        %692 = vmatpush1.msra.mxu0 0.0
        %693 = vmatprep.subr.mxu0 0.0
        %694 = vmatpush1.msra.mxu0 0.0
        %695 = vmatprep.subr.mxu0 0.0
        %696 = vmatpush1.msra.mxu0 0.0
        %697 = vmatprep.subr.mxu0 0.0
        %698 = vmatpush1.msra.mxu0 0.0
        %699 = vmatprep.subr.mxu0 0.0
        %700 = vmatpush1.msra.mxu0 0.0
        %701 = vmatprep.subr.mxu0 0.0
        %702 = vmatpush1.msra.mxu0 0.0
        %703 = vmatprep.subr.mxu0 0.0
        %704 = vmatpush1.msra.mxu0 0.0
        %705 = vmatprep.subr.mxu0 0.0
        %706 = vmatpush1.msra.mxu0 0.0
        %707 = vmatprep.subr.mxu0 0.0
        %708 = vmatpush1.msra.mxu0 0.0
        %709 = vmatprep.subr.mxu0 0.0
        %710 = vmatpush1.msra.mxu0 0.0
        %711 = vmatprep.subr.mxu0 0.0
        %712 = vmatpush1.msra.mxu0 0.0
        %713 = vmatprep.subr.mxu0 0.0
        %714 = vmatpush1.msra.mxu0 0.0
        %715 = vmatprep.subr.mxu0 0.0
        %716 = vmatpush1.msra.mxu0 0.0
        %717 = vmatprep.subr.mxu0 0.0
        %718 = vmatpush1.msra.mxu0 0.0
        %719 = vmatprep.subr.mxu0 0.0
        %720 = vmatpush1.msra.mxu0 0.0
        %721 = vmatprep.subr.mxu0 0.0
        %722 = vmatpush1.msra.mxu0 0.0
        %723 = vmatprep.subr.mxu0 0.0
        %724 = vmatpush1.msra.mxu0 0.0
        %725 = vmatprep.subr.mxu0 0.0
        %726 = vmatpush1.msra.mxu0 0.0
        %727 = vmatprep.subr.mxu0 0.0
        %728 = vmatpush1.msra.mxu0 0.0
        %729 = vmatprep.subr.mxu0 0.0
        %730 = vmatpush1.msra.mxu0 0.0
        %731 = vmatprep.mubr.f32.mxu0 0.0
        %732 = vmatmul.mubr.f32.gmra.mrb[0].mxu0 %v386
        %v733 = vpop.f32.mrb[0].mxu0
        %v734 = vadd.f32 0.0, %v733
        %v735 = vpop.f32.mrb[0].mxu0
        %v736 = vadd.f32 0.0, %v735
        %737 = vmatprep.mubr.f32.mxu0 0.0
        %738 = vmatmul.mubr.f32.gmra.mrb[0].mxu0 %v389
        %v739 = vpop.f32.mrb[0].mxu0
        %v740 = vadd.f32 0.0, %v739
        %v741 = vpop.f32.mrb[0].mxu0
        %v742 = vadd.f32 0.0, %v741
        %743 = vmatprep.mubr.f32.mxu0 0.0
        %744 = vmatmul.mubr.f32.gmra.mrb[0].mxu0 %v392
        %v745 = vpop.f32.mrb[0].mxu0
        %v746 = vadd.f32 0.0, %v745
        %v747 = vpop.f32.mrb[0].mxu0
        %v748 = vadd.f32 0.0, %v747
        %749 = vmatprep.mubr.f32.mxu0 0.0
        %750 = vmatmul.mubr.f32.gmra.mrb[0].mxu0 %v395
        %v751 = vpop.f32.mrb[0].mxu0
        %v752 = vadd.f32 0.0, %v751
        %v753 = vpop.f32.mrb[0].mxu0
        %v754 = vadd.f32 0.0, %v753
        %755 = vmatprep.mubr.f32.mxu0 0.0
        %756 = vmatmul.mubr.f32.gmra.mrb[0].mxu0 %v398
        %v757 = vpop.f32.mrb[0].mxu0
        %v758 = vadd.f32 0.0, %v757
        %v759 = vpop.f32.mrb[0].mxu0
        %v760 = vadd.f32 0.0, %v759
        %761 = vmatprep.mubr.f32.mxu0 0.0
        %762 = vmatmul.mubr.f32.gmra.mrb[0].mxu0 %v401
        %v763 = vpop.f32.mrb[0].mxu0
        %v764 = vadd.f32 0.0, %v763
        %v765 = vpop.f32.mrb[0].mxu0
        %v766 = vadd.f32 0.0, %v765
        %767 = vmatprep.mubr.f32.mxu0 0.0
        %768 = vmatmul.mubr.f32.gmra.mrb[0].mxu0 %v404
        %v769 = vpop.f32.mrb[0].mxu0
        %v770 = vadd.f32 0.0, %v769
        %v771 = vpop.f32.mrb[0].mxu0
        %v772 = vadd.f32 0.0, %v771
        %773 = vmatprep.mubr.f32.mxu0 0.0
        %774 = vmatmul.mubr.f32.gmra.mrb[0].mxu0 %v407
        %v775 = vpop.f32.mrb[0].mxu0
        %v776 = vadd.f32 0.0, %v775
        %v777 = vpop.f32.mrb[0].mxu0
        %v778 = vadd.f32 0.0, %v777
        %779 = vdwg.mxu0
        %780 = vmatprep.subr.mxu0 %v591
        %781 = vmatpush1.msra.mxu0 %v589
        %782 = vmatprep.subr.mxu0 %v597
        %783 = vmatpush1.msra.mxu0 %v595
        %784 = vmatprep.subr.mxu0 %v603
        %785 = vmatpush1.msra.mxu0 %v601
        %786 = vmatprep.subr.mxu0 %v609
        %787 = vmatpush1.msra.mxu0 %v607
        %788 = vmatprep.subr.mxu0 %v615
        %789 = vmatpush1.msra.mxu0 %v613
        %790 = vmatprep.subr.mxu0 %v621
        %791 = vmatpush1.msra.mxu0 %v619
        %792 = vmatprep.subr.mxu0 %v627
        %793 = vmatpush1.msra.mxu0 %v625
        %794 = vmatprep.subr.mxu0 %v633
        %795 = vmatpush1.msra.mxu0 %v631
        %796 = vmatprep.subr.mxu0 0.0
        %797 = vmatpush1.msra.mxu0 0.0
        %798 = vmatprep.subr.mxu0 0.0
        %799 = vmatpush1.msra.mxu0 0.0
        %800 = vmatprep.subr.mxu0 0.0
        %801 = vmatpush1.msra.mxu0 0.0
        %802 = vmatprep.subr.mxu0 0.0
        %803 = vmatpush1.msra.mxu0 0.0
        %804 = vmatprep.subr.mxu0 0.0
        %805 = vmatpush1.msra.mxu0 0.0
        %806 = vmatprep.subr.mxu0 0.0
        %807 = vmatpush1.msra.mxu0 0.0
        %808 = vmatprep.subr.mxu0 0.0
        %809 = vmatpush1.msra.mxu0 0.0
        %810 = vmatprep.subr.mxu0 0.0
        %811 = vmatpush1.msra.mxu0 0.0
        %812 = vmatprep.subr.mxu0 0.0
        %813 = vmatpush1.msra.mxu0 0.0
        %814 = vmatprep.subr.mxu0 0.0
        %815 = vmatpush1.msra.mxu0 0.0
        %816 = vmatprep.subr.mxu0 0.0
        %817 = vmatpush1.msra.mxu0 0.0
        %818 = vmatprep.subr.mxu0 0.0
        %819 = vmatpush1.msra.mxu0 0.0
        %820 = vmatprep.subr.mxu0 0.0
        %821 = vmatpush1.msra.mxu0 0.0
        %822 = vmatprep.subr.mxu0 0.0
        %823 = vmatpush1.msra.mxu0 0.0
        %824 = vmatprep.subr.mxu0 0.0
        %825 = vmatpush1.msra.mxu0 0.0
        %826 = vmatprep.subr.mxu0 0.0
        %827 = vmatpush1.msra.mxu0 0.0
        %828 = vmatprep.subr.mxu0 0.0
        %829 = vmatpush1.msra.mxu0 0.0
        %830 = vmatprep.subr.mxu0 0.0
        %831 = vmatpush1.msra.mxu0 0.0
        %832 = vmatprep.subr.mxu0 0.0
        %833 = vmatpush1.msra.mxu0 0.0
        %834 = vmatprep.subr.mxu0 0.0
        %835 = vmatpush1.msra.mxu0 0.0
        %836 = vmatprep.subr.mxu0 0.0
        %837 = vmatpush1.msra.mxu0 0.0
        %838 = vmatprep.subr.mxu0 0.0
        %839 = vmatpush1.msra.mxu0 0.0
        %840 = vmatprep.subr.mxu0 0.0
        %841 = vmatpush1.msra.mxu0 0.0
        %842 = vmatprep.subr.mxu0 0.0
        %843 = vmatpush1.msra.mxu0 0.0
        %844 = vmatprep.mubr.f32.mxu0 0.0
        %845 = vmatmul.mubr.f32.gmra.mrb[0].mxu0 %v386
        %v846 = vpop.f32.mrb[0].mxu0
        %v847 = vadd.f32 0.0, %v846
        %v848 = vpop.f32.mrb[0].mxu0
        %v849 = vadd.f32 0.0, %v848
        %850 = vmatprep.mubr.f32.mxu0 0.0
        %851 = vmatmul.mubr.f32.gmra.mrb[0].mxu0 %v389
        %v852 = vpop.f32.mrb[0].mxu0
        %v853 = vadd.f32 0.0, %v852
        %v854 = vpop.f32.mrb[0].mxu0
        %v855 = vadd.f32 0.0, %v854
        %856 = vmatprep.mubr.f32.mxu0 0.0
        %857 = vmatmul.mubr.f32.gmra.mrb[0].mxu0 %v392
        %v858 = vpop.f32.mrb[0].mxu0
        %v859 = vadd.f32 0.0, %v858
        %v860 = vpop.f32.mrb[0].mxu0
        %v861 = vadd.f32 0.0, %v860
        %862 = vmatprep.mubr.f32.mxu0 0.0
        %863 = vmatmul.mubr.f32.gmra.mrb[0].mxu0 %v395
        %v864 = vpop.f32.mrb[0].mxu0
        %v865 = vadd.f32 0.0, %v864
        %v866 = vpop.f32.mrb[0].mxu0
        %v867 = vadd.f32 0.0, %v866
        %868 = vmatprep.mubr.f32.mxu0 0.0
        %869 = vmatmul.mubr.f32.gmra.mrb[0].mxu0 %v398
        %v870 = vpop.f32.mrb[0].mxu0
        %v871 = vadd.f32 0.0, %v870
        %v872 = vpop.f32.mrb[0].mxu0
        %v873 = vadd.f32 0.0, %v872
        %874 = vmatprep.mubr.f32.mxu0 0.0
        %875 = vmatmul.mubr.f32.gmra.mrb[0].mxu0 %v401
        %v876 = vpop.f32.mrb[0].mxu0
        %v877 = vadd.f32 0.0, %v876
        %v878 = vpop.f32.mrb[0].mxu0
        %v879 = vadd.f32 0.0, %v878
        %880 = vmatprep.mubr.f32.mxu0 0.0
        %881 = vmatmul.mubr.f32.gmra.mrb[0].mxu0 %v404
        %v882 = vpop.f32.mrb[0].mxu0
        %v883 = vadd.f32 0.0, %v882
        %v884 = vpop.f32.mrb[0].mxu0
        %v885 = vadd.f32 0.0, %v884
        %886 = vmatprep.mubr.f32.mxu0 0.0
        %887 = vmatmul.mubr.f32.gmra.mrb[0].mxu0 %v407
        %v888 = vpop.f32.mrb[0].mxu0
        %v889 = vadd.f32 0.0, %v888
        %v890 = vpop.f32.mrb[0].mxu0
        %v891 = vadd.f32 0.0, %v890
        %892 = vdwg.mxu0
        %893 = vst [vmem:[#allocation2 + $0x200] sm:$0xff] %v734
        %894 = vst [vmem:[#allocation2 + $0x208] sm:$0xff] %v736
        %895 = vst [vmem:[#allocation2 + $0x210] sm:$0xff] %v847
        %896 = vst [vmem:[#allocation2 + $0x218] sm:$0xff] %v849
        %897 = vst [vmem:[#allocation2 + $0x220] sm:$0xff] %v740
        %898 = vst [vmem:[#allocation2 + $0x228] sm:$0xff] %v742
        %899 = vst [vmem:[#allocation2 + $0x230] sm:$0xff] %v853
        %900 = vst [vmem:[#allocation2 + $0x238] sm:$0xff] %v855
        %901 = vst [vmem:[#allocation2 + $0x240] sm:$0xff] %v746
        %902 = vst [vmem:[#allocation2 + $0x248] sm:$0xff] %v748
        %903 = vst [vmem:[#allocation2 + $0x250] sm:$0xff] %v859
        %904 = vst [vmem:[#allocation2 + $0x258] sm:$0xff] %v861
        %905 = vst [vmem:[#allocation2 + $0x260] sm:$0xff] %v752
        %906 = vst [vmem:[#allocation2 + $0x268] sm:$0xff] %v754
        %907 = vst [vmem:[#allocation2 + $0x270] sm:$0xff] %v865
        %908 = vst [vmem:[#allocation2 + $0x278] sm:$0xff] %v867
        %909 = vst [vmem:[#allocation2 + $0x280] sm:$0xff] %v758
        %910 = vst [vmem:[#allocation2 + $0x288] sm:$0xff] %v760
        %911 = vst [vmem:[#allocation2 + $0x290] sm:$0xff] %v871
        %912 = vst [vmem:[#allocation2 + $0x298] sm:$0xff] %v873
        %913 = vst [vmem:[#allocation2 + $0x2a0] sm:$0xff] %v764
        %914 = vst [vmem:[#allocation2 + $0x2a8] sm:$0xff] %v766
        %915 = vst [vmem:[#allocation2 + $0x2b0] sm:$0xff] %v877
        %916 = vst [vmem:[#allocation2 + $0x2b8] sm:$0xff] %v879
        %917 = vst [vmem:[#allocation2 + $0x2c0] sm:$0xff] %v770
        %918 = vst [vmem:[#allocation2 + $0x2c8] sm:$0xff] %v772
        %919 = vst [vmem:[#allocation2 + $0x2d0] sm:$0xff] %v883
        %920 = vst [vmem:[#allocation2 + $0x2d8] sm:$0xff] %v885
        %921 = vst [vmem:[#allocation2 + $0x2e0] sm:$0xff] %v776
        %922 = vst [vmem:[#allocation2 + $0x2e8] sm:$0xff] %v778
        %923 = vst [vmem:[#allocation2 + $0x2f0] sm:$0xff] %v889
        %924 = vst [vmem:[#allocation2 + $0x2f8] sm:$0xff] %v891
        %v925 = vld [vmem:[%s2] sm:$0xff]
        %v926 = vld [vmem:[%s2 + $0x8] sm:$0xff]
        %v927 = vld [vmem:[%s2 + $0x10] sm:$0xff]
        %v928 = vld [vmem:[%s2 + $0x18] sm:$0xff]
        %v929 = vld [vmem:[%s2 + $0x20] sm:$0xff]
        %v930 = vld [vmem:[%s2 + $0x28] sm:$0xff]
        %v931 = vld [vmem:[%s2 + $0x30] sm:$0xff]
        %v932 = vld [vmem:[%s2 + $0x38] sm:$0xff]
        %v933 = vld [vmem:[%s2 + $0x40] sm:$0xff]
        %v934 = vld [vmem:[%s2 + $0x48] sm:$0xff]
        %v935 = vld [vmem:[%s2 + $0x50] sm:$0xff]
        %v936 = vld [vmem:[%s2 + $0x58] sm:$0xff]
        %v937 = vld [vmem:[%s2 + $0x60] sm:$0xff]
        %v938 = vld [vmem:[%s2 + $0x68] sm:$0xff]
        %v939 = vld [vmem:[%s2 + $0x70] sm:$0xff]
        %v940 = vld [vmem:[%s2 + $0x78] sm:$0xff]
        %v941 = vld [vmem:[%s2 + $0x80] sm:$0xff]
        %v942 = vld [vmem:[%s2 + $0x88] sm:$0xff]
        %v943 = vld [vmem:[%s2 + $0x90] sm:$0xff]
        %v944 = vld [vmem:[%s2 + $0x98] sm:$0xff]
        %v945 = vld [vmem:[%s2 + $0xa0] sm:$0xff]
        %v946 = vld [vmem:[%s2 + $0xa8] sm:$0xff]
        %v947 = vld [vmem:[%s2 + $0xb0] sm:$0xff]
        %v948 = vld [vmem:[%s2 + $0xb8] sm:$0xff]
        %v949 = vld [vmem:[%s2 + $0xc0] sm:$0xff]
        %v950 = vld [vmem:[%s2 + $0xc8] sm:$0xff]
        %v951 = vld [vmem:[%s2 + $0xd0] sm:$0xff]
        %v952 = vld [vmem:[%s2 + $0xd8] sm:$0xff]
        %v953 = vld [vmem:[%s2 + $0xe0] sm:$0xff]
        %v954 = vld [vmem:[%s2 + $0xe8] sm:$0xff]
        %v955 = vld [vmem:[%s2 + $0xf0] sm:$0xff]
        %v956 = vld [vmem:[%s2 + $0xf8] sm:$0xff]
        %v957 = vld [vmem:[#allocation2] sm:$0xff]
        %v958 = vld [vmem:[#allocation2 + $0x8] sm:$0xff]
        %v959 = vld [vmem:[#allocation2 + $0x10] sm:$0xff]
        %v960 = vld [vmem:[#allocation2 + $0x18] sm:$0xff]
        %v961 = vld [vmem:[#allocation2 + $0x20] sm:$0xff]
        %v962 = vld [vmem:[#allocation2 + $0x28] sm:$0xff]
        %v963 = vld [vmem:[#allocation2 + $0x30] sm:$0xff]
        %v964 = vld [vmem:[#allocation2 + $0x38] sm:$0xff]
        %v965 = vld [vmem:[#allocation2 + $0x40] sm:$0xff]
        %v966 = vld [vmem:[#allocation2 + $0x48] sm:$0xff]
        %v967 = vld [vmem:[#allocation2 + $0x50] sm:$0xff]
        %v968 = vld [vmem:[#allocation2 + $0x58] sm:$0xff]
        %v969 = vld [vmem:[#allocation2 + $0x60] sm:$0xff]
        %v970 = vld [vmem:[#allocation2 + $0x68] sm:$0xff]
        %v971 = vld [vmem:[#allocation2 + $0x70] sm:$0xff]
        %v972 = vld [vmem:[#allocation2 + $0x78] sm:$0xff]
        %v973 = vld [vmem:[#allocation2 + $0x80] sm:$0xff]
        %v974 = vld [vmem:[#allocation2 + $0x88] sm:$0xff]
        %v975 = vld [vmem:[#allocation2 + $0x90] sm:$0xff]
        %v976 = vld [vmem:[#allocation2 + $0x98] sm:$0xff]
        %v977 = vld [vmem:[#allocation2 + $0xa0] sm:$0xff]
        %v978 = vld [vmem:[#allocation2 + $0xa8] sm:$0xff]
        %v979 = vld [vmem:[#allocation2 + $0xb0] sm:$0xff]
        %v980 = vld [vmem:[#allocation2 + $0xb8] sm:$0xff]
        %v981 = vld [vmem:[#allocation2 + $0xc0] sm:$0xff]
        %v982 = vld [vmem:[#allocation2 + $0xc8] sm:$0xff]
        %v983 = vld [vmem:[#allocation2 + $0xd0] sm:$0xff]
        %v984 = vld [vmem:[#allocation2 + $0xd8] sm:$0xff]
        %v985 = vld [vmem:[#allocation2 + $0xe0] sm:$0xff]
        %v986 = vld [vmem:[#allocation2 + $0xe8] sm:$0xff]
        %v987 = vld [vmem:[#allocation2 + $0xf0] sm:$0xff]
        %v988 = vld [vmem:[#allocation2 + $0xf8] sm:$0xff]
        %v989 = vld [vmem:[#allocation2 + $0x100] sm:$0xff]
        %v990 = vld [vmem:[#allocation2 + $0x108] sm:$0xff]
        %v991 = vld [vmem:[#allocation2 + $0x110] sm:$0xff]
        %v992 = vld [vmem:[#allocation2 + $0x118] sm:$0xff]
        %v993 = vld [vmem:[#allocation2 + $0x120] sm:$0xff]
        %v994 = vld [vmem:[#allocation2 + $0x128] sm:$0xff]
        %v995 = vld [vmem:[#allocation2 + $0x130] sm:$0xff]
        %v996 = vld [vmem:[#allocation2 + $0x138] sm:$0xff]
        %v997 = vld [vmem:[#allocation2 + $0x140] sm:$0xff]
        %v998 = vld [vmem:[#allocation2 + $0x148] sm:$0xff]
        %v999 = vld [vmem:[#allocation2 + $0x150] sm:$0xff]
        %v1000 = vld [vmem:[#allocation2 + $0x158] sm:$0xff]
        %v1001 = vld [vmem:[#allocation2 + $0x160] sm:$0xff]
        %v1002 = vld [vmem:[#allocation2 + $0x168] sm:$0xff]
        %v1003 = vld [vmem:[#allocation2 + $0x170] sm:$0xff]
        %v1004 = vld [vmem:[#allocation2 + $0x178] sm:$0xff]
        %v1005 = vld [vmem:[#allocation2 + $0x180] sm:$0xff]
        %v1006 = vld [vmem:[#allocation2 + $0x188] sm:$0xff]
        %v1007 = vld [vmem:[#allocation2 + $0x190] sm:$0xff]
        %v1008 = vld [vmem:[#allocation2 + $0x198] sm:$0xff]
        %v1009 = vld [vmem:[#allocation2 + $0x1a0] sm:$0xff]
        %v1010 = vld [vmem:[#allocation2 + $0x1a8] sm:$0xff]
        %v1011 = vld [vmem:[#allocation2 + $0x1b0] sm:$0xff]
        %v1012 = vld [vmem:[#allocation2 + $0x1b8] sm:$0xff]
        %v1013 = vld [vmem:[#allocation2 + $0x1c0] sm:$0xff]
        %v1014 = vld [vmem:[#allocation2 + $0x1c8] sm:$0xff]
        %v1015 = vld [vmem:[#allocation2 + $0x1d0] sm:$0xff]
        %v1016 = vld [vmem:[#allocation2 + $0x1d8] sm:$0xff]
        %v1017 = vld [vmem:[#allocation2 + $0x1e0] sm:$0xff]
        %v1018 = vld [vmem:[#allocation2 + $0x1e8] sm:$0xff]
        %v1019 = vld [vmem:[#allocation2 + $0x1f0] sm:$0xff]
        %v1020 = vld [vmem:[#allocation2 + $0x1f8] sm:$0xff]
        %v1021 = vld [vmem:[#allocation2 + $0x200] sm:$0xff]
        %v1022 = vld [vmem:[#allocation2 + $0x208] sm:$0xff]
        %v1023 = vld [vmem:[#allocation2 + $0x210] sm:$0xff]
        %v1024 = vld [vmem:[#allocation2 + $0x218] sm:$0xff]
        %v1025 = vld [vmem:[#allocation2 + $0x220] sm:$0xff]
        %v1026 = vld [vmem:[#allocation2 + $0x228] sm:$0xff]
        %v1027 = vld [vmem:[#allocation2 + $0x230] sm:$0xff]
        %v1028 = vld [vmem:[#allocation2 + $0x238] sm:$0xff]
        %v1029 = vld [vmem:[#allocation2 + $0x240] sm:$0xff]
        %v1030 = vld [vmem:[#allocation2 + $0x248] sm:$0xff]
        %v1031 = vld [vmem:[#allocation2 + $0x250] sm:$0xff]
        %v1032 = vld [vmem:[#allocation2 + $0x258] sm:$0xff]
        %v1033 = vld [vmem:[#allocation2 + $0x260] sm:$0xff]
        %v1034 = vld [vmem:[#allocation2 + $0x268] sm:$0xff]
        %v1035 = vld [vmem:[#allocation2 + $0x270] sm:$0xff]
        %v1036 = vld [vmem:[#allocation2 + $0x278] sm:$0xff]
        %v1037 = vld [vmem:[#allocation2 + $0x280] sm:$0xff]
        %v1038 = vld [vmem:[#allocation2 + $0x288] sm:$0xff]
        %v1039 = vld [vmem:[#allocation2 + $0x290] sm:$0xff]
        %v1040 = vld [vmem:[#allocation2 + $0x298] sm:$0xff]
        %v1041 = vld [vmem:[#allocation2 + $0x2a0] sm:$0xff]
        %v1042 = vld [vmem:[#allocation2 + $0x2a8] sm:$0xff]
        %v1043 = vld [vmem:[#allocation2 + $0x2b0] sm:$0xff]
        %v1044 = vld [vmem:[#allocation2 + $0x2b8] sm:$0xff]
        %v1045 = vld [vmem:[#allocation2 + $0x2c0] sm:$0xff]
        %v1046 = vld [vmem:[#allocation2 + $0x2c8] sm:$0xff]
        %v1047 = vld [vmem:[#allocation2 + $0x2d0] sm:$0xff]
        %v1048 = vld [vmem:[#allocation2 + $0x2d8] sm:$0xff]
        %v1049 = vld [vmem:[#allocation2 + $0x2e0] sm:$0xff]
        %v1050 = vld [vmem:[#allocation2 + $0x2e8] sm:$0xff]
        %v1051 = vld [vmem:[#allocation2 + $0x2f0] sm:$0xff]
        %v1052 = vld [vmem:[#allocation2 + $0x2f8] sm:$0xff]
        %v1053 = vld [vmem:[%s3] sm:$0xff]
        %v1054 = vld [vmem:[%s3 + $0x8] sm:$0xff]
        %v1055 = vld [vmem:[%s3 + $0x10] sm:$0xff]
        %v1056 = vld [vmem:[%s3 + $0x18] sm:$0xff]
        %v1057 = vld [vmem:[%s3 + $0x20] sm:$0xff]
        %v1058 = vld [vmem:[%s3 + $0x28] sm:$0xff]
        %v1059 = vld [vmem:[%s3 + $0x30] sm:$0xff]
        %v1060 = vld [vmem:[%s3 + $0x38] sm:$0xff]
        %v1061 = vld [vmem:[%s3 + $0x40] sm:$0xff]
        %v1062 = vld [vmem:[%s3 + $0x48] sm:$0xff]
        %v1063 = vld [vmem:[%s3 + $0x50] sm:$0xff]
        %v1064 = vld [vmem:[%s3 + $0x58] sm:$0xff]
        %v1065 = vld [vmem:[%s3 + $0x60] sm:$0xff]
        %v1066 = vld [vmem:[%s3 + $0x68] sm:$0xff]
        %v1067 = vld [vmem:[%s3 + $0x70] sm:$0xff]
        %v1068 = vld [vmem:[%s3 + $0x78] sm:$0xff]
        %1070 = vset.pattern.permute.xlu0 0
        %1071 = vperm.xlu0 %1070, %v1053
        %v1072 = vpop.permute.xlu0 %1071
        %1075 = vset.pattern.permute.xlu0 0
        %1076 = vperm.xlu0 %1075, %v1054
        %v1077 = vpop.permute.xlu0 %1076
        %1080 = vset.pattern.permute.xlu0 0
        %1081 = vperm.xlu0 %1080, %v1055
        %v1082 = vpop.permute.xlu0 %1081
        %1085 = vset.pattern.permute.xlu0 0
        %1086 = vperm.xlu0 %1085, %v1056
        %v1087 = vpop.permute.xlu0 %1086
        %1090 = vset.pattern.permute.xlu0 0
        %1091 = vperm.xlu0 %1090, %v1057
        %v1092 = vpop.permute.xlu0 %1091
        %1095 = vset.pattern.permute.xlu0 0
        %1096 = vperm.xlu0 %1095, %v1058
        %v1097 = vpop.permute.xlu0 %1096
        %1100 = vset.pattern.permute.xlu0 0
        %1101 = vperm.xlu0 %1100, %v1059
        %v1102 = vpop.permute.xlu0 %1101
        %1105 = vset.pattern.permute.xlu0 0
        %1106 = vperm.xlu0 %1105, %v1060
        %v1107 = vpop.permute.xlu0 %1106
        %1110 = vset.pattern.permute.xlu0 0
        %1111 = vperm.xlu0 %1110, %v1061
        %v1112 = vpop.permute.xlu0 %1111
        %1115 = vset.pattern.permute.xlu0 0
        %1116 = vperm.xlu0 %1115, %v1062
        %v1117 = vpop.permute.xlu0 %1116
        %1120 = vset.pattern.permute.xlu0 0
        %1121 = vperm.xlu0 %1120, %v1063
        %v1122 = vpop.permute.xlu0 %1121
        %1125 = vset.pattern.permute.xlu0 0
        %1126 = vperm.xlu0 %1125, %v1064
        %v1127 = vpop.permute.xlu0 %1126
        %1130 = vset.pattern.permute.xlu0 0
        %1131 = vperm.xlu0 %1130, %v1065
        %v1132 = vpop.permute.xlu0 %1131
        %1135 = vset.pattern.permute.xlu0 0
        %1136 = vperm.xlu0 %1135, %v1066
        %v1137 = vpop.permute.xlu0 %1136
        %1140 = vset.pattern.permute.xlu0 0
        %1141 = vperm.xlu0 %1140, %v1067
        %v1142 = vpop.permute.xlu0 %1141
        %1145 = vset.pattern.permute.xlu0 0
        %1146 = vperm.xlu0 %1145, %v1068
        %v1147 = vpop.permute.xlu0 %1146
        %v1150 = vsel %vm384, %v926, 0
        %v1153 = vsel %vm384, %v928, 0
        %v1156 = vsel %vm384, %v930, 0
        %v1159 = vsel %vm384, %v932, 0
        %v1162 = vsel %vm384, %v934, 0
        %v1165 = vsel %vm384, %v936, 0
        %v1168 = vsel %vm384, %v938, 0
        %v1171 = vsel %vm384, %v940, 0
        %v1174 = vsel %vm384, %v942, 0
        %v1177 = vsel %vm384, %v944, 0
        %v1180 = vsel %vm384, %v946, 0
        %v1183 = vsel %vm384, %v948, 0
        %v1186 = vsel %vm384, %v950, 0
        %v1189 = vsel %vm384, %v952, 0
        %v1192 = vsel %vm384, %v954, 0
        %v1195 = vsel %vm384, %v956, 0
        %1197 = vmatprep.subr.mxu0 %v958
        %1198 = vmatpush1.msra.mxu0 %v957
        %1199 = vmatprep.subr.mxu0 %v962
        %1200 = vmatpush1.msra.mxu0 %v961
        %1201 = vmatprep.subr.mxu0 %v966
        %1202 = vmatpush1.msra.mxu0 %v965
        %1203 = vmatprep.subr.mxu0 %v970
        %1204 = vmatpush1.msra.mxu0 %v969
        %1205 = vmatprep.subr.mxu0 %v974
        %1206 = vmatpush1.msra.mxu0 %v973
        %1207 = vmatprep.subr.mxu0 %v978
        %1208 = vmatpush1.msra.mxu0 %v977
        %1209 = vmatprep.subr.mxu0 %v982
        %1210 = vmatpush1.msra.mxu0 %v981
        %1211 = vmatprep.subr.mxu0 %v986
        %1212 = vmatpush1.msra.mxu0 %v985
        %1213 = vmatprep.subr.mxu0 %v990
        %1214 = vmatpush1.msra.mxu0 %v989
        %1215 = vmatprep.subr.mxu0 %v994
        %1216 = vmatpush1.msra.mxu0 %v993
        %1217 = vmatprep.subr.mxu0 %v998
        %1218 = vmatpush1.msra.mxu0 %v997
        %1219 = vmatprep.subr.mxu0 %v1002
        %1220 = vmatpush1.msra.mxu0 %v1001
        %1221 = vmatprep.subr.mxu0 %v1006
        %1222 = vmatpush1.msra.mxu0 %v1005
        %1223 = vmatprep.subr.mxu0 %v1010
        %1224 = vmatpush1.msra.mxu0 %v1009
        %1225 = vmatprep.subr.mxu0 %v1014
        %1226 = vmatpush1.msra.mxu0 %v1013
        %1227 = vmatprep.subr.mxu0 %v1018
        %1228 = vmatpush1.msra.mxu0 %v1017
        %1229 = vmatprep.subr.mxu0 %v1022
        %1230 = vmatpush1.msra.mxu0 %v1021
        %1231 = vmatprep.subr.mxu0 %v1026
        %1232 = vmatpush1.msra.mxu0 %v1025
        %1233 = vmatprep.subr.mxu0 %v1030
        %1234 = vmatpush1.msra.mxu0 %v1029
        %1235 = vmatprep.subr.mxu0 %v1034
        %1236 = vmatpush1.msra.mxu0 %v1033
        %1237 = vmatprep.subr.mxu0 %v1038
        %1238 = vmatpush1.msra.mxu0 %v1037
        %1239 = vmatprep.subr.mxu0 %v1042
        %1240 = vmatpush1.msra.mxu0 %v1041
        %1241 = vmatprep.subr.mxu0 %v1046
        %1242 = vmatpush1.msra.mxu0 %v1045
        %1243 = vmatprep.subr.mxu0 %v1050
        %1244 = vmatpush1.msra.mxu0 %v1049
        %1245 = vmatprep.subr.mxu0 0.0
        %1246 = vmatpush1.msra.mxu0 0.0
        %1247 = vmatprep.subr.mxu0 0.0
        %1248 = vmatpush1.msra.mxu0 0.0
        %1249 = vmatprep.subr.mxu0 0.0
        %1250 = vmatpush1.msra.mxu0 0.0
        %1251 = vmatprep.subr.mxu0 0.0
        %1252 = vmatpush1.msra.mxu0 0.0
        %1253 = vmatprep.subr.mxu0 0.0
        %1254 = vmatpush1.msra.mxu0 0.0
        %1255 = vmatprep.subr.mxu0 0.0
        %1256 = vmatpush1.msra.mxu0 0.0
        %1257 = vmatprep.subr.mxu0 0.0
        %1258 = vmatpush1.msra.mxu0 0.0
        %1259 = vmatprep.subr.mxu0 0.0
        %1260 = vmatpush1.msra.mxu0 0.0
        %1261 = vmatprep.mubr.f32.mxu0 %v1150
        %1262 = vmatmul.mubr.f32.gmra.mrb[0].mxu0 %v925
        %v1263 = vpop.f32.mrb[0].mxu0
        %v1264 = vadd.f32 %v1072, %v1263
        %v1265 = vpop.f32.mrb[0].mxu0
        %v1266 = vadd.f32 %v1072, %v1265
        %1267 = vmatprep.mubr.f32.mxu0 %v1153
        %1268 = vmatmul.mubr.f32.gmra.mrb[0].mxu0 %v927
        %v1269 = vpop.f32.mrb[0].mxu0
        %v1270 = vadd.f32 %v1077, %v1269
        %v1271 = vpop.f32.mrb[0].mxu0
        %v1272 = vadd.f32 %v1077, %v1271
        %1273 = vmatprep.mubr.f32.mxu0 %v1156
        %1274 = vmatmul.mubr.f32.gmra.mrb[0].mxu0 %v929
        %v1275 = vpop.f32.mrb[0].mxu0
        %v1276 = vadd.f32 %v1082, %v1275
        %v1277 = vpop.f32.mrb[0].mxu0
        %v1278 = vadd.f32 %v1082, %v1277
        %1279 = vmatprep.mubr.f32.mxu0 %v1159
        %1280 = vmatmul.mubr.f32.gmra.mrb[0].mxu0 %v931
        %v1281 = vpop.f32.mrb[0].mxu0
        %v1282 = vadd.f32 %v1087, %v1281
        %v1283 = vpop.f32.mrb[0].mxu0
        %v1284 = vadd.f32 %v1087, %v1283
        %1285 = vmatprep.mubr.f32.mxu0 %v1162
        %1286 = vmatmul.mubr.f32.gmra.mrb[0].mxu0 %v933
        %v1287 = vpop.f32.mrb[0].mxu0
        %v1288 = vadd.f32 %v1092, %v1287
        %v1289 = vpop.f32.mrb[0].mxu0
        %v1290 = vadd.f32 %v1092, %v1289
        %1291 = vmatprep.mubr.f32.mxu0 %v1165
        %1292 = vmatmul.mubr.f32.gmra.mrb[0].mxu0 %v935
        %v1293 = vpop.f32.mrb[0].mxu0
        %v1294 = vadd.f32 %v1097, %v1293
        %v1295 = vpop.f32.mrb[0].mxu0
        %v1296 = vadd.f32 %v1097, %v1295
        %1297 = vmatprep.mubr.f32.mxu0 %v1168
        %1298 = vmatmul.mubr.f32.gmra.mrb[0].mxu0 %v937
        %v1299 = vpop.f32.mrb[0].mxu0
        %v1300 = vadd.f32 %v1102, %v1299
        %v1301 = vpop.f32.mrb[0].mxu0
        %v1302 = vadd.f32 %v1102, %v1301
        %1303 = vmatprep.mubr.f32.mxu0 %v1171
        %1304 = vmatmul.mubr.f32.gmra.mrb[0].mxu0 %v939
        %v1305 = vpop.f32.mrb[0].mxu0
        %v1306 = vadd.f32 %v1107, %v1305
        %v1307 = vpop.f32.mrb[0].mxu0
        %v1308 = vadd.f32 %v1107, %v1307
        %1309 = vmatprep.mubr.f32.mxu0 %v1174
        %1310 = vmatmul.mubr.f32.gmra.mrb[0].mxu0 %v941
        %v1311 = vpop.f32.mrb[0].mxu0
        %v1312 = vadd.f32 %v1112, %v1311
        %v1313 = vpop.f32.mrb[0].mxu0
        %v1314 = vadd.f32 %v1112, %v1313
        %1315 = vmatprep.mubr.f32.mxu0 %v1177
        %1316 = vmatmul.mubr.f32.gmra.mrb[0].mxu0 %v943
        %v1317 = vpop.f32.mrb[0].mxu0
        %v1318 = vadd.f32 %v1117, %v1317
        %v1319 = vpop.f32.mrb[0].mxu0
        %v1320 = vadd.f32 %v1117, %v1319
        %1321 = vmatprep.mubr.f32.mxu0 %v1180
        %1322 = vmatmul.mubr.f32.gmra.mrb[0].mxu0 %v945
        %v1323 = vpop.f32.mrb[0].mxu0
        %v1324 = vadd.f32 %v1122, %v1323
        %v1325 = vpop.f32.mrb[0].mxu0
        %v1326 = vadd.f32 %v1122, %v1325
        %1327 = vmatprep.mubr.f32.mxu0 %v1183
        %1328 = vmatmul.mubr.f32.gmra.mrb[0].mxu0 %v947
        %v1329 = vpop.f32.mrb[0].mxu0
        %v1330 = vadd.f32 %v1127, %v1329
        %v1331 = vpop.f32.mrb[0].mxu0
        %v1332 = vadd.f32 %v1127, %v1331
        %1333 = vmatprep.mubr.f32.mxu0 %v1186
        %1334 = vmatmul.mubr.f32.gmra.mrb[0].mxu0 %v949
        %v1335 = vpop.f32.mrb[0].mxu0
        %v1336 = vadd.f32 %v1132, %v1335
        %v1337 = vpop.f32.mrb[0].mxu0
        %v1338 = vadd.f32 %v1132, %v1337
        %1339 = vmatprep.mubr.f32.mxu0 %v1189
        %1340 = vmatmul.mubr.f32.gmra.mrb[0].mxu0 %v951
        %v1341 = vpop.f32.mrb[0].mxu0
        %v1342 = vadd.f32 %v1137, %v1341
        %v1343 = vpop.f32.mrb[0].mxu0
        %v1344 = vadd.f32 %v1137, %v1343
        %1345 = vmatprep.mubr.f32.mxu0 %v1192
        %1346 = vmatmul.mubr.f32.gmra.mrb[0].mxu0 %v953
        %v1347 = vpop.f32.mrb[0].mxu0
        %v1348 = vadd.f32 %v1142, %v1347
        %v1349 = vpop.f32.mrb[0].mxu0
        %v1350 = vadd.f32 %v1142, %v1349
        %1351 = vmatprep.mubr.f32.mxu0 %v1195
        %1352 = vmatmul.mubr.f32.gmra.mrb[0].mxu0 %v955
        %v1353 = vpop.f32.mrb[0].mxu0
        %v1354 = vadd.f32 %v1147, %v1353
        %v1355 = vpop.f32.mrb[0].mxu0
        %v1356 = vadd.f32 %v1147, %v1355
        %1357 = vdwg.mxu0
        %1358 = vmatprep.subr.mxu0 %v960
        %1359 = vmatpush1.msra.mxu0 %v959
        %1360 = vmatprep.subr.mxu0 %v964
        %1361 = vmatpush1.msra.mxu0 %v963
        %1362 = vmatprep.subr.mxu0 %v968
        %1363 = vmatpush1.msra.mxu0 %v967
        %1364 = vmatprep.subr.mxu0 %v972
        %1365 = vmatpush1.msra.mxu0 %v971
        %1366 = vmatprep.subr.mxu0 %v976
        %1367 = vmatpush1.msra.mxu0 %v975
        %1368 = vmatprep.subr.mxu0 %v980
        %1369 = vmatpush1.msra.mxu0 %v979
        %1370 = vmatprep.subr.mxu0 %v984
        %1371 = vmatpush1.msra.mxu0 %v983
        %1372 = vmatprep.subr.mxu0 %v988
        %1373 = vmatpush1.msra.mxu0 %v987
        %1374 = vmatprep.subr.mxu0 %v992
        %1375 = vmatpush1.msra.mxu0 %v991
        %1376 = vmatprep.subr.mxu0 %v996
        %1377 = vmatpush1.msra.mxu0 %v995
        %1378 = vmatprep.subr.mxu0 %v1000
        %1379 = vmatpush1.msra.mxu0 %v999
        %1380 = vmatprep.subr.mxu0 %v1004
        %1381 = vmatpush1.msra.mxu0 %v1003
        %1382 = vmatprep.subr.mxu0 %v1008
        %1383 = vmatpush1.msra.mxu0 %v1007
        %1384 = vmatprep.subr.mxu0 %v1012
        %1385 = vmatpush1.msra.mxu0 %v1011
        %1386 = vmatprep.subr.mxu0 %v1016
        %1387 = vmatpush1.msra.mxu0 %v1015
        %1388 = vmatprep.subr.mxu0 %v1020
        %1389 = vmatpush1.msra.mxu0 %v1019
        %1390 = vmatprep.subr.mxu0 %v1024
        %1391 = vmatpush1.msra.mxu0 %v1023
        %1392 = vmatprep.subr.mxu0 %v1028
        %1393 = vmatpush1.msra.mxu0 %v1027
        %1394 = vmatprep.subr.mxu0 %v1032
        %1395 = vmatpush1.msra.mxu0 %v1031
        %1396 = vmatprep.subr.mxu0 %v1036
        %1397 = vmatpush1.msra.mxu0 %v1035
        %1398 = vmatprep.subr.mxu0 %v1040
        %1399 = vmatpush1.msra.mxu0 %v1039
        %1400 = vmatprep.subr.mxu0 %v1044
        %1401 = vmatpush1.msra.mxu0 %v1043
        %1402 = vmatprep.subr.mxu0 %v1048
        %1403 = vmatpush1.msra.mxu0 %v1047
        %1404 = vmatprep.subr.mxu0 %v1052
        %1405 = vmatpush1.msra.mxu0 %v1051
        %1406 = vmatprep.subr.mxu0 0.0
        %1407 = vmatpush1.msra.mxu0 0.0
        %1408 = vmatprep.subr.mxu0 0.0
        %1409 = vmatpush1.msra.mxu0 0.0
        %1410 = vmatprep.subr.mxu0 0.0
        %1411 = vmatpush1.msra.mxu0 0.0
        %1412 = vmatprep.subr.mxu0 0.0
        %1413 = vmatpush1.msra.mxu0 0.0
        %1414 = vmatprep.subr.mxu0 0.0
        %1415 = vmatpush1.msra.mxu0 0.0
        %1416 = vmatprep.subr.mxu0 0.0
        %1417 = vmatpush1.msra.mxu0 0.0
        %1418 = vmatprep.subr.mxu0 0.0
        %1419 = vmatpush1.msra.mxu0 0.0
        %1420 = vmatprep.subr.mxu0 0.0
        %1421 = vmatpush1.msra.mxu0 0.0
        %1422 = vmatprep.mubr.f32.mxu0 %v1150
        %1423 = vmatmul.mubr.f32.gmra.mrb[0].mxu0 %v925
        %v1424 = vpop.f32.mrb[0].mxu0
        %v1425 = vadd.f32 %v1072, %v1424
        %v1426 = vpop.f32.mrb[0].mxu0
        %v1427 = vadd.f32 %v1072, %v1426
        %1428 = vmatprep.mubr.f32.mxu0 %v1153
        %1429 = vmatmul.mubr.f32.gmra.mrb[0].mxu0 %v927
        %v1430 = vpop.f32.mrb[0].mxu0
        %v1431 = vadd.f32 %v1077, %v1430
        %v1432 = vpop.f32.mrb[0].mxu0
        %v1433 = vadd.f32 %v1077, %v1432
        %1434 = vmatprep.mubr.f32.mxu0 %v1156
        %1435 = vmatmul.mubr.f32.gmra.mrb[0].mxu0 %v929
        %v1436 = vpop.f32.mrb[0].mxu0
        %v1437 = vadd.f32 %v1082, %v1436
        %v1438 = vpop.f32.mrb[0].mxu0
        %v1439 = vadd.f32 %v1082, %v1438
        %1440 = vmatprep.mubr.f32.mxu0 %v1159
        %1441 = vmatmul.mubr.f32.gmra.mrb[0].mxu0 %v931
        %v1442 = vpop.f32.mrb[0].mxu0
        %v1443 = vadd.f32 %v1087, %v1442
        %v1444 = vpop.f32.mrb[0].mxu0
        %v1445 = vadd.f32 %v1087, %v1444
        %1446 = vmatprep.mubr.f32.mxu0 %v1162
        %1447 = vmatmul.mubr.f32.gmra.mrb[0].mxu0 %v933
        %v1448 = vpop.f32.mrb[0].mxu0
        %v1449 = vadd.f32 %v1092, %v1448
        %v1450 = vpop.f32.mrb[0].mxu0
        %v1451 = vadd.f32 %v1092, %v1450
        %1452 = vmatprep.mubr.f32.mxu0 %v1165
        %1453 = vmatmul.mubr.f32.gmra.mrb[0].mxu0 %v935
        %v1454 = vpop.f32.mrb[0].mxu0
        %v1455 = vadd.f32 %v1097, %v1454
        %v1456 = vpop.f32.mrb[0].mxu0
        %v1457 = vadd.f32 %v1097, %v1456
        %1458 = vmatprep.mubr.f32.mxu0 %v1168
        %1459 = vmatmul.mubr.f32.gmra.mrb[0].mxu0 %v937
        %v1460 = vpop.f32.mrb[0].mxu0
        %v1461 = vadd.f32 %v1102, %v1460
        %v1462 = vpop.f32.mrb[0].mxu0
        %v1463 = vadd.f32 %v1102, %v1462
        %1464 = vmatprep.mubr.f32.mxu0 %v1171
        %1465 = vmatmul.mubr.f32.gmra.mrb[0].mxu0 %v939
        %v1466 = vpop.f32.mrb[0].mxu0
        %v1467 = vadd.f32 %v1107, %v1466
        %v1468 = vpop.f32.mrb[0].mxu0
        %v1469 = vadd.f32 %v1107, %v1468
        %1470 = vmatprep.mubr.f32.mxu0 %v1174
        %1471 = vmatmul.mubr.f32.gmra.mrb[0].mxu0 %v941
        %v1472 = vpop.f32.mrb[0].mxu0
        %v1473 = vadd.f32 %v1112, %v1472
        %v1474 = vpop.f32.mrb[0].mxu0
        %v1475 = vadd.f32 %v1112, %v1474
        %1476 = vmatprep.mubr.f32.mxu0 %v1177
        %1477 = vmatmul.mubr.f32.gmra.mrb[0].mxu0 %v943
        %v1478 = vpop.f32.mrb[0].mxu0
        %v1479 = vadd.f32 %v1117, %v1478
        %v1480 = vpop.f32.mrb[0].mxu0
        %v1481 = vadd.f32 %v1117, %v1480
        %1482 = vmatprep.mubr.f32.mxu0 %v1180
        %1483 = vmatmul.mubr.f32.gmra.mrb[0].mxu0 %v945
        %v1484 = vpop.f32.mrb[0].mxu0
        %v1485 = vadd.f32 %v1122, %v1484
        %v1486 = vpop.f32.mrb[0].mxu0
        %v1487 = vadd.f32 %v1122, %v1486
        %1488 = vmatprep.mubr.f32.mxu0 %v1183
        %1489 = vmatmul.mubr.f32.gmra.mrb[0].mxu0 %v947
        %v1490 = vpop.f32.mrb[0].mxu0
        %v1491 = vadd.f32 %v1127, %v1490
        %v1492 = vpop.f32.mrb[0].mxu0
        %v1493 = vadd.f32 %v1127, %v1492
        %1494 = vmatprep.mubr.f32.mxu0 %v1186
        %1495 = vmatmul.mubr.f32.gmra.mrb[0].mxu0 %v949
        %v1496 = vpop.f32.mrb[0].mxu0
        %v1497 = vadd.f32 %v1132, %v1496
        %v1498 = vpop.f32.mrb[0].mxu0
        %v1499 = vadd.f32 %v1132, %v1498
        %1500 = vmatprep.mubr.f32.mxu0 %v1189
        %1501 = vmatmul.mubr.f32.gmra.mrb[0].mxu0 %v951
        %v1502 = vpop.f32.mrb[0].mxu0
        %v1503 = vadd.f32 %v1137, %v1502
        %v1504 = vpop.f32.mrb[0].mxu0
        %v1505 = vadd.f32 %v1137, %v1504
        %1506 = vmatprep.mubr.f32.mxu0 %v1192
        %1507 = vmatmul.mubr.f32.gmra.mrb[0].mxu0 %v953
        %v1508 = vpop.f32.mrb[0].mxu0
        %v1509 = vadd.f32 %v1142, %v1508
        %v1510 = vpop.f32.mrb[0].mxu0
        %v1511 = vadd.f32 %v1142, %v1510
        %1512 = vmatprep.mubr.f32.mxu0 %v1195
        %1513 = vmatmul.mubr.f32.gmra.mrb[0].mxu0 %v955
        %v1514 = vpop.f32.mrb[0].mxu0
        %v1515 = vadd.f32 %v1147, %v1514
        %v1516 = vpop.f32.mrb[0].mxu0
        %v1517 = vadd.f32 %v1147, %v1516
        %1518 = vdwg.mxu0
        %1519 = vst [vmem:[%s277] sm:$0xff] %v1264
        %1520 = vst [vmem:[%s277 + $0x8] sm:$0xff] %v1266
        %1521 = vst [vmem:[%s277 + $0x10] sm:$0xff] %v1425
        %1522 = vst [vmem:[%s277 + $0x18] sm:$0xff] %v1427
        %1523 = vst [vmem:[%s277 + $0x20] sm:$0xff] %v1270
        %1524 = vst [vmem:[%s277 + $0x28] sm:$0xff] %v1272
        %1525 = vst [vmem:[%s277 + $0x30] sm:$0xff] %v1431
        %1526 = vst [vmem:[%s277 + $0x38] sm:$0xff] %v1433
        %1527 = vst [vmem:[%s277 + $0x40] sm:$0xff] %v1276
        %1528 = vst [vmem:[%s277 + $0x48] sm:$0xff] %v1278
        %1529 = vst [vmem:[%s277 + $0x50] sm:$0xff] %v1437
        %1530 = vst [vmem:[%s277 + $0x58] sm:$0xff] %v1439
        %1531 = vst [vmem:[%s277 + $0x60] sm:$0xff] %v1282
        %1532 = vst [vmem:[%s277 + $0x68] sm:$0xff] %v1284
        %1533 = vst [vmem:[%s277 + $0x70] sm:$0xff] %v1443
        %1534 = vst [vmem:[%s277 + $0x78] sm:$0xff] %v1445
        %1535 = vst [vmem:[%s277 + $0x80] sm:$0xff] %v1288
        %1536 = vst [vmem:[%s277 + $0x88] sm:$0xff] %v1290
        %1537 = vst [vmem:[%s277 + $0x90] sm:$0xff] %v1449
        %1538 = vst [vmem:[%s277 + $0x98] sm:$0xff] %v1451
        %1539 = vst [vmem:[%s277 + $0xa0] sm:$0xff] %v1294
        %1540 = vst [vmem:[%s277 + $0xa8] sm:$0xff] %v1296
        %1541 = vst [vmem:[%s277 + $0xb0] sm:$0xff] %v1455
        %1542 = vst [vmem:[%s277 + $0xb8] sm:$0xff] %v1457
        %1543 = vst [vmem:[%s277 + $0xc0] sm:$0xff] %v1300
        %1544 = vst [vmem:[%s277 + $0xc8] sm:$0xff] %v1302
        %1545 = vst [vmem:[%s277 + $0xd0] sm:$0xff] %v1461
        %1546 = vst [vmem:[%s277 + $0xd8] sm:$0xff] %v1463
        %1547 = vst [vmem:[%s277 + $0xe0] sm:$0xff] %v1306
        %1548 = vst [vmem:[%s277 + $0xe8] sm:$0xff] %v1308
        %1549 = vst [vmem:[%s277 + $0xf0] sm:$0xff] %v1467
        %1550 = vst [vmem:[%s277 + $0xf8] sm:$0xff] %v1469
        %1551 = vst [vmem:[%s277 + $0x100] sm:$0xff] %v1312
        %1552 = vst [vmem:[%s277 + $0x108] sm:$0xff] %v1314
        %1553 = vst [vmem:[%s277 + $0x110] sm:$0xff] %v1473
        %1554 = vst [vmem:[%s277 + $0x118] sm:$0xff] %v1475
        %1555 = vst [vmem:[%s277 + $0x120] sm:$0xff] %v1318
        %1556 = vst [vmem:[%s277 + $0x128] sm:$0xff] %v1320
        %1557 = vst [vmem:[%s277 + $0x130] sm:$0xff] %v1479
        %1558 = vst [vmem:[%s277 + $0x138] sm:$0xff] %v1481
        %1559 = vst [vmem:[%s277 + $0x140] sm:$0xff] %v1324
        %1560 = vst [vmem:[%s277 + $0x148] sm:$0xff] %v1326
        %1561 = vst [vmem:[%s277 + $0x150] sm:$0xff] %v1485
        %1562 = vst [vmem:[%s277 + $0x158] sm:$0xff] %v1487
        %1563 = vst [vmem:[%s277 + $0x160] sm:$0xff] %v1330
        %1564 = vst [vmem:[%s277 + $0x168] sm:$0xff] %v1332
        %1565 = vst [vmem:[%s277 + $0x170] sm:$0xff] %v1491
        %1566 = vst [vmem:[%s277 + $0x178] sm:$0xff] %v1493
        %1567 = vst [vmem:[%s277 + $0x180] sm:$0xff] %v1336
        %1568 = vst [vmem:[%s277 + $0x188] sm:$0xff] %v1338
        %1569 = vst [vmem:[%s277 + $0x190] sm:$0xff] %v1497
        %1570 = vst [vmem:[%s277 + $0x198] sm:$0xff] %v1499
        %1571 = vst [vmem:[%s277 + $0x1a0] sm:$0xff] %v1342
        %1572 = vst [vmem:[%s277 + $0x1a8] sm:$0xff] %v1344
        %1573 = vst [vmem:[%s277 + $0x1b0] sm:$0xff] %v1503
        %1574 = vst [vmem:[%s277 + $0x1b8] sm:$0xff] %v1505
        %1575 = vst [vmem:[%s277 + $0x1c0] sm:$0xff] %v1348
        %1576 = vst [vmem:[%s277 + $0x1c8] sm:$0xff] %v1350
        %1577 = vst [vmem:[%s277 + $0x1d0] sm:$0xff] %v1509
        %1578 = vst [vmem:[%s277 + $0x1d8] sm:$0xff] %v1511
        %1579 = vst [vmem:[%s277 + $0x1e0] sm:$0xff] %v1354
        %1580 = vst [vmem:[%s277 + $0x1e8] sm:$0xff] %v1356
        %1581 = vst [vmem:[%s277 + $0x1f0] sm:$0xff] %v1515
        %1582 = vst [vmem:[%s277 + $0x1f8] sm:$0xff] %v1517
        %s1583 = sand.u32 %s115, 1
        %s1584 = scalar_lea.sflag [#allocation5], %s1583
        %s1585 = sand.u32 %s115, 1
        %s1586 = smul.addr %s1585, 512
        %s1587 = scalar_lea.vmem [#allocation4], %s1586
        // Predicated region
        $region60: #{tpu_custom_call.1} parent=54 // pred_check
          %p1588 = pneg %p125
        $region61: #{tpu_custom_call.1} parent=54 // pred_check_branch
          %1590 = sbr.rel (%p1588) target = $region63
        $region62: #{tpu_custom_call.1} parent=54 // pred_region
          %s1591 = smul.u32 4, %s18
          %s1593 = ssub.s32 8192, 8192
          %1594 = vsyncadd %s1584, %s1593
          %s1595 = smul.addr %s1591, 128
          %s1596 = scalar_lea.hbm %s4, %s1595
          %s1597 = sshll.u32 %s1587, 4
          %s1598 = int_to_ptr.vmem [resolvable:$true] %s1597
          %1603 = dma.vmem_to_hbm [thread:$0]  %s1598, 8192, %s1596, %s1584, 512, 1024, 32
        $region63: #{tpu_custom_call.1} parent=54 // pred_fallthru
          _
      $region55: #{tpu_custom_call.1} parent=5 // pred_fallthru
        _
      %p1604 = scmp.le.s32.totalorder 2, %s13
      // Predicated region
      $region64: #{tpu_custom_call.1} parent=5 // pred_check
        %p1605 = pneg %p1604
      $region65: #{tpu_custom_call.1} parent=5 // pred_check_branch
        %1607 = sbr.rel (%p1605) target = $region67
      $region66: #{tpu_custom_call.1} parent=5 // pred_region
        %s1608 = ssub.s32 %s13, 2
        // Predicated region
        $region68: #{tpu_custom_call.1} parent=66 // pred_check
          %p1609 = pneg %p131
        $region69: #{tpu_custom_call.1} parent=66 // pred_check_branch
          %1611 = sbr.rel (%p1609) target = $region71
        $region70: #{tpu_custom_call.1} parent=66 // pred_region
          %s1612 = sand.u32 %s116, 1
          %s1613 = scalar_lea.sflag [#allocation5], %s1612
          %s1614 = sand.u32 %s116, 1
          %s1615 = smul.addr %s1614, 512
          %s1616 = scalar_lea.vmem [#allocation4], %s1615
          %1617 = dma.done %s1613, 8192
        $region71: #{tpu_custom_call.1} parent=66 // pred_fallthru
          _
      $region67: #{tpu_custom_call.1} parent=5 // pred_fallthru
        _
    $region6: #{tpu_custom_call.1} parent=1 // loop_footer
      %s17 = sadd.s32 1, %s13
    $region7: #{tpu_custom_call.1} parent=1 // loop_footer_branch
      %12 = sbr.rel target = $region3
    $region8: #{tpu_custom_call.1} parent=1 // loop_exit
      _
    %1618 = vsyncpa [#allocation5], 1
    %s1619 = scalar_lea.sflag [#allocation5], 1
    %1620 = vsyncpa %s1619, 1

</llo_original>
